<compile_context>
chip_gen: v7x
topology: tpu7x:2x2x1
jax: 0.10.0
libtpu: 0.0.40
codegen_flags: <defaults>
</compile_context>

<pallas_src>
import functools

import jax
import jax.numpy as jnp
from jax.experimental import pallas as pl
from jax.experimental.pallas import tpu as pltpu


# ------------------------------ fused kernel ------------------------------

def _fused_vit_classifier_kernel(
    patches_ref, patchw_ref, tok_ref,              # patch embed + token init
    lnfg_ref, lnfb_ref, clsw_ref, clsb_ref,        # final LN + classifier
    ln1g_ref, ln1b_ref, qkvw_ref, qkvb_ref,        # per-layer (selected by l)
    projw_ref, projb_ref, ln2g_ref, ln2b_ref,
    fc1w_ref, fc1b_ref, fc2w_ref, fc2b_ref,
    out_ref,                                       # (Bp, NCP) padded logits
    x_scratch,                                     # (M, D) resident activation
    *, num_heads, head_dim, batch, batch_pad, tokens_pad, valid_tokens, eps):
  l = pl.program_id(0)
  num_layers = pl.num_programs(0)
  dmodel = num_heads * head_dim
  bf16 = jnp.bfloat16
  f32 = jnp.float32

  def _layernorm(x, g_ref, b_ref):
    mean = jnp.mean(x, axis=-1, keepdims=True)
    var = jnp.mean(jnp.square(x - mean), axis=-1, keepdims=True)
    xn = (x - mean) * jax.lax.rsqrt(var + eps)
    return xn * g_ref[...] + b_ref[...]

  def _linear(x_f32, w_ref, b_ref):
    # bf16 MXU inputs, f32 accumulation; bias add in f32.
    y = jnp.dot(x_f32.astype(bf16), w_ref[...], preferred_element_type=f32)
    return y + b_ref[...]

  # ---- grid step 0: patch-embed matmul + [CLS]/pos assembly into VMEM ----
  @pl.when(l == 0)
  def _init():
    emb = jnp.dot(patches_ref[...], patchw_ref[...],
                  preferred_element_type=f32)          # (M, D) f32 acc
    # tok_ref holds cls+pos[0] in CLS rows, pos[i]+patch_bias in patch rows
    # and zeros in pad rows; patches_ref has zero CLS/pad rows.
    x_scratch[...] = emb + tok_ref[...]

  x = x_scratch[...]                                   # (M, D) f32

  # ---- self-attention sub-block (pre-LN, residual fused) ----
  h = _layernorm(x, ln1g_ref, ln1b_ref)
  qkv = _linear(h, qkvw_ref, qkvb_ref)                 # (M, 3D)
  qkv = qkv.reshape(batch, tokens_pad, 3 * dmodel)     # (B, Tp, 3D)
  if tokens_pad > valid_tokens:                        # mask padded key tokens
    key_bias = jnp.where(
        jax.lax.broadcasted_iota(jnp.int32, (1, 1, tokens_pad), 2)
        < valid_tokens, 0.0, -1e30).astype(f32)
  else:
    key_bias = None
  scale = 1.0 / (head_dim ** 0.5)

  head_outs = []
  for hh in range(num_heads):                          # heads are lane slices
    o = hh * head_dim
    # fold the 1/sqrt(dh) scale into q (cheaper than scaling the TpxTp scores)
    qh = (qkv[:, :, o:o + head_dim] * scale).astype(bf16)
    kh = qkv[:, :, dmodel + o:dmodel + o + head_dim].astype(bf16)
    vh = qkv[:, :, 2 * dmodel + o:2 * dmodel + o + head_dim].astype(bf16)
    s = jnp.einsum('bqd,bkd->bqk', qh, kh,
                   preferred_element_type=f32)             # (B, Tp, Tp)
    if key_bias is not None:
      s = s + key_bias
    s = s - jnp.max(s, axis=-1, keepdims=True)
    p = jnp.exp(s)
    p = p * pl.reciprocal(jnp.sum(p, axis=-1, keepdims=True), approx=True)
    head_outs.append(jnp.einsum('bqk,bkd->bqd', p.astype(bf16), vh,
                                preferred_element_type=f32))
  attn = jnp.concatenate(head_outs, axis=-1)           # (B, Tp, D)
  attn = attn.reshape(batch * tokens_pad, dmodel)      # (M, D)
  x = x + _linear(attn, projw_ref, projb_ref)          # residual fused

  # ---- MLP sub-block (pre-LN, residual fused) ----
  h = _layernorm(x, ln2g_ref, ln2b_ref)
  h = _linear(h, fc1w_ref, fc1b_ref)
  # TODO(synk): HF DINO uses exact (erf) GELU; tanh approximation used here
  # for a guaranteed Mosaic lowering.
  h = jax.nn.gelu(h, approximate=True)
  x = x + _linear(h, fc2w_ref, fc2b_ref)
  x_scratch[...] = x

  # ---- last layer: final LN + classifier on the CLS token only ----
  @pl.when(l == num_layers - 1)
  def _final():
    cls_x = x.reshape(batch, tokens_pad, dmodel)[:, 0, :]   # (B, D)
    cls_x = _layernorm(cls_x, lnfg_ref, lnfb_ref)
    logits = jnp.dot(cls_x.astype(bf16), clsw_ref[...],
                     preferred_element_type=f32) + clsb_ref[...]   # (B, NCP)
    if batch_pad > batch:
      logits = jnp.concatenate(
          [logits, jnp.zeros((batch_pad - batch, logits.shape[-1]), f32)],
          axis=0)
    out_ref[...] = logits.astype(out_ref.dtype)


# --------------------------- model construction ---------------------------

def init_params(key, *, in_chans, patch, embed_dim, num_heads, num_layers,
                mlp_dim, num_classes, num_tokens):
  del num_heads  # head split is a view of the fused qkv weights
  D, F, L = embed_dim, mlp_dim, num_layers
  CPP = in_chans * patch * patch

  def nrm(k, shape, std=0.02):
    return (std * jax.random.normal(k, shape)).astype(jnp.float32)

  ks = jax.random.split(key, 8)
  return {
      "patch_w": nrm(ks[0], (CPP, D)),
      "patch_b": jnp.zeros((D,), jnp.float32),
      "cls": nrm(ks[1], (1, 1, D)),
      "pos": nrm(ks[2], (1, num_tokens, D)),
      "lnf_g": jnp.ones((D,), jnp.float32),
      "lnf_b": jnp.zeros((D,), jnp.float32),
      # classifier == nn.Linear(embed_dim, num_classes); stored (in, out)
      "cls_w": nrm(ks[3], (D, num_classes)),
      "cls_b": jnp.zeros((num_classes,), jnp.float32),
      # per-layer params stacked on a leading L axis (selected via index_map)
      "ln1_g": jnp.ones((L, D), jnp.float32),
      "ln1_b": jnp.zeros((L, D), jnp.float32),
      "qkv_w": nrm(ks[4], (L, D, 3 * D)),
      "qkv_b": jnp.zeros((L, 3 * D), jnp.float32),
      "proj_w": nrm(ks[5], (L, D, D)),
      "proj_b": jnp.zeros((L, D), jnp.float32),
      "ln2_g": jnp.ones((L, D), jnp.float32),
      "ln2_b": jnp.zeros((L, D), jnp.float32),
      "fc1_w": nrm(ks[6], (L, D, F)),
      "fc1_b": jnp.zeros((L, F), jnp.float32),
      "fc2_w": nrm(ks[7], (L, F, D)),
      "fc2_b": jnp.zeros((L, D), jnp.float32),
  }


def image_classifier_finetuner_forward(params, pixel_values, *, patch,
                                       embed_dim, num_heads, num_classes):
  """Equivalent of ImageClassifierFineTuner.forward(pixel_values)."""
  B, C, H, W = pixel_values.shape
  D = embed_dim
  NH = num_heads
  DH = D // NH
  hp, wp = H // patch, W // patch
  NP = hp * wp
  T = NP + 1                              # patches + CLS
  Tp = ((T + 7) // 8) * 8                 # pad tokens to sublane multiple
  M = B * Tp
  Bp = ((B + 7) // 8) * 8                 # pad batch rows for aligned store
  CPP = C * patch * patch
  L = params["qkv_w"].shape[0]
  F = params["fc1_w"].shape[-1]
  NC = num_classes
  NCP = ((NC + 127) // 128) * 128         # lane-dense padded classifier width
  bf16 = jnp.bfloat16

  # ---- plain-JAX glue: patch extraction + parameter packing (no compute) ----
  patches = pixel_values.reshape(B, C, hp, patch, wp, patch)
  patches = patches.transpose(0, 2, 4, 1, 3, 5).reshape(B, NP, CPP)
  patches = jnp.concatenate(
      [jnp.zeros((B, 1, CPP), patches.dtype),            # CLS slot
       patches,
       jnp.zeros((B, Tp - T, CPP), patches.dtype)],      # token padding
      axis=1).reshape(M, CPP).astype(bf16)               # bf16 -> half the DMA

  cls_row = params["cls"].reshape(1, D) + params["pos"][0, 0:1, :]
  patch_rows = params["pos"][0, 1:T, :] + params["patch_b"].reshape(1, D)
  tok = jnp.concatenate(
      [cls_row, patch_rows, jnp.zeros((Tp - T, D), jnp.float32)], axis=0)
  tok = jnp.tile(tok, (B, 1))                            # (M, D)

  cls_w = jnp.pad(params["cls_w"], ((0, 0), (0, NCP - NC))).astype(bf16)
  cls_b = jnp.pad(params["cls_b"], (0, NCP - NC)).reshape(1, NCP)

  args = (
      patches,                               # (M, CPP) bf16
      params["patch_w"].astype(bf16),        # (CPP, D)
      tok,                                   # (M, D)
      params["lnf_g"].reshape(1, D),
      params["lnf_b"].reshape(1, D),
      cls_w,                                 # (D, NCP) bf16
      cls_b,                                 # (1, NCP)
      params["ln1_g"].reshape(L, 1, D),
      params["ln1_b"].reshape(L, 1, D),
      params["qkv_w"].astype(bf16),          # (L, D, 3D)
      params["qkv_b"].reshape(L, 1, 3 * D),
      params["proj_w"].astype(bf16),         # (L, D, D)
      params["proj_b"].reshape(L, 1, D),
      params["ln2_g"].reshape(L, 1, D),
      params["ln2_b"].reshape(L, 1, D),
      params["fc1_w"].astype(bf16),          # (L, D, F)
      params["fc1_b"].reshape(L, 1, F),
      params["fc2_w"].astype(bf16),          # (L, F, D)
      params["fc2_b"].reshape(L, 1, D),
  )

  def const_spec(shape):                     # resident across all layers
    n = len(shape)
    return pl.BlockSpec(shape, lambda l: (0,) * n)

  def layer_spec(shape):                     # per-layer slice of stacked param
    n = len(shape)
    return pl.BlockSpec((None,) + shape, lambda l: (l,) + (0,) * n)

  in_specs = [
      const_spec((M, CPP)), const_spec((CPP, D)), const_spec((M, D)),
      const_spec((1, D)), const_spec((1, D)),
      const_spec((D, NCP)), const_spec((1, NCP)),
      layer_spec((1, D)), layer_spec((1, D)),
      layer_spec((D, 3 * D)), layer_spec((1, 3 * D)),
      layer_spec((D, D)), layer_spec((1, D)),
      layer_spec((1, D)), layer_spec((1, D)),
      layer_spec((D, F)), layer_spec((1, F)),
      layer_spec((F, D)), layer_spec((1, D)),
  ]

  kernel = functools.partial(
      _fused_vit_classifier_kernel,
      num_heads=NH, head_dim=DH, batch=B, batch_pad=Bp, tokens_pad=Tp,
      valid_tokens=T, eps=1e-12)

  out = pl.pallas_call(
      kernel,
      out_shape=jax.ShapeDtypeStruct((Bp, NCP), jnp.float32),
      grid=(L,),
      in_specs=in_specs,
      out_specs=const_spec((Bp, NCP)),
      scratch_shapes=[pltpu.VMEM((M, D), jnp.float32)],
      compiler_params=pltpu.CompilerParams(
          dimension_semantics=("arbitrary",)),   # layer loop carries state
  )(*args)

  # Drop batch/class padding.
  return out[:B, :NC]


# --------------------------------- main ---------------------------------

if __name__ == "__main__":
  B, C, H, W = 2, 3, 16, 16
  PATCH = 8
  EMBED_DIM = 32
  NUM_HEADS = 4
  NUM_LAYERS = 2
  MLP_DIM = 4 * EMBED_DIM
  NUM_CLASSES = 10
  NUM_TOKENS = (H // PATCH) * (W // PATCH) + 1   # patches + CLS

  key = jax.random.PRNGKey(0)
  k_params, k_input = jax.random.split(key)
  params = init_params(
      k_params, in_chans=C, patch=PATCH, embed_dim=EMBED_DIM,
      num_heads=NUM_HEADS, num_layers=NUM_LAYERS, mlp_dim=MLP_DIM,
      num_classes=NUM_CLASSES, num_tokens=NUM_TOKENS)

  pixel_values = jax.random.normal(k_input, (B, C, H, W), jnp.float32)

  fwd = jax.jit(functools.partial(
      image_classifier_finetuner_forward, patch=PATCH, embed_dim=EMBED_DIM,
      num_heads=NUM_HEADS, num_classes=NUM_CLASSES))

  logits = fwd(params, pixel_values)
  jax.block_until_ready(logits)
  assert logits.shape == (B, NUM_CLASSES), logits.shape
  assert bool(jnp.all(jnp.isfinite(logits)))
  print("KERNEL_OK")
</pallas_src>

<mosaic_0001>
module attributes {stable_mosaic.version = 11 : i64} {
  func.func @_fused_vit_classifier_kernel(%arg0: i32, %arg1: memref<16x192xbf16, #tpu.memory_space<vmem>>, %arg2: memref<192x32xbf16, #tpu.memory_space<vmem>>, %arg3: memref<16x32xf32, #tpu.memory_space<vmem>>, %arg4: memref<1x32xf32, #tpu.memory_space<vmem>>, %arg5: memref<1x32xf32, #tpu.memory_space<vmem>>, %arg6: memref<32x128xbf16, #tpu.memory_space<vmem>>, %arg7: memref<1x128xf32, #tpu.memory_space<vmem>>, %arg8: memref<1x1x32xf32, #tpu.memory_space<vmem>>, %arg9: memref<1x1x32xf32, #tpu.memory_space<vmem>>, %arg10: memref<1x32x96xbf16, #tpu.memory_space<vmem>>, %arg11: memref<1x1x96xf32, #tpu.memory_space<vmem>>, %arg12: memref<1x32x32xbf16, #tpu.memory_space<vmem>>, %arg13: memref<1x1x32xf32, #tpu.memory_space<vmem>>, %arg14: memref<1x1x32xf32, #tpu.memory_space<vmem>>, %arg15: memref<1x1x32xf32, #tpu.memory_space<vmem>>, %arg16: memref<1x32x128xbf16, #tpu.memory_space<vmem>>, %arg17: memref<1x1x128xf32, #tpu.memory_space<vmem>>, %arg18: memref<1x128x32xbf16, #tpu.memory_space<vmem>>, %arg19: memref<1x1x32xf32, #tpu.memory_space<vmem>>, %arg20: memref<8x128xf32, #tpu.memory_space<vmem>>, %arg21: memref<16x32xf32, #tpu.memory_space<vmem>>) attributes {dimension_semantics = [#tpu.dimension_semantics<arbitrary>], iteration_bounds = array<i64: 2>, scalar_prefetch = 0 : i64, scratch_operands = 1 : i64, tpu.core_type = #tpu.core_type<tc>, window_params = [{pipeline_mode = #tpu.pipeline_mode<synchronous>, transform_indices = @transform_0, window_bounds = array<i64: 16, 192>}, {pipeline_mode = #tpu.pipeline_mode<synchronous>, transform_indices = @transform_1, window_bounds = array<i64: 192, 32>}, {pipeline_mode = #tpu.pipeline_mode<synchronous>, transform_indices = @transform_2, window_bounds = array<i64: 16, 32>}, {pipeline_mode = #tpu.pipeline_mode<synchronous>, transform_indices = @transform_3, window_bounds = array<i64: 1, 32>}, {pipeline_mode = #tpu.pipeline_mode<synchronous>, transform_indices = @transform_4, window_bounds = array<i64: 1, 32>}, {pipeline_mode = #tpu.pipeline_mode<synchronous>, transform_indices = @transform_5, window_bounds = array<i64: 32, 128>}, {pipeline_mode = #tpu.pipeline_mode<synchronous>, transform_indices = @transform_6, window_bounds = array<i64: 1, 128>}, {transform_indices = @transform_7, window_bounds = array<i64: 1, 1, 32>}, {transform_indices = @transform_8, window_bounds = array<i64: 1, 1, 32>}, {transform_indices = @transform_9, window_bounds = array<i64: 1, 32, 96>}, {transform_indices = @transform_10, window_bounds = array<i64: 1, 1, 96>}, {transform_indices = @transform_11, window_bounds = array<i64: 1, 32, 32>}, {transform_indices = @transform_12, window_bounds = array<i64: 1, 1, 32>}, {transform_indices = @transform_13, window_bounds = array<i64: 1, 1, 32>}, {transform_indices = @transform_14, window_bounds = array<i64: 1, 1, 32>}, {transform_indices = @transform_15, window_bounds = array<i64: 1, 32, 128>}, {transform_indices = @transform_16, window_bounds = array<i64: 1, 1, 128>}, {transform_indices = @transform_17, window_bounds = array<i64: 1, 128, 32>}, {transform_indices = @transform_18, window_bounds = array<i64: 1, 1, 32>}, {pipeline_mode = #tpu.pipeline_mode<synchronous>, transform_indices = @transform_19, window_bounds = array<i64: 8, 128>}]} {
    %c0_i32 = arith.constant 0 : i32
    %0 = arith.cmpi eq, %arg0, %c0_i32 : i32
    %1 = arith.extui %0 : i1 to i32
    %c0_i32_0 = arith.constant 0 : i32
    %2 = arith.cmpi ne, %1, %c0_i32_0 : i32
    scf.if %2 {
      %c0_80 = arith.constant 0 : index
      %c0_81 = arith.constant 0 : index
      %208 = vector.load %arg1[%c0_80, %c0_81] : memref<16x192xbf16, #tpu.memory_space<vmem>>, vector<16x192xbf16>
      %c0_82 = arith.constant 0 : index
      %c0_83 = arith.constant 0 : index
      %209 = vector.load %arg2[%c0_82, %c0_83] : memref<192x32xbf16, #tpu.memory_space<vmem>>, vector<192x32xbf16>
      %cst_84 = arith.constant dense<0.000000e+00> : vector<16x32xf32>
      %210 = tpu.matmul %208, %209, %cst_84 {dimension_numbers = #tpu.dot_dimension_numbers<[1], [0], [0], [1], [0, 0, 1, 1], [], []>} : vector<16x192xbf16>, vector<192x32xbf16>, vector<16x32xf32> -> vector<16x32xf32>
      %c0_85 = arith.constant 0 : index
      %c0_86 = arith.constant 0 : index
      %211 = vector.load %arg3[%c0_85, %c0_86] : memref<16x32xf32, #tpu.memory_space<vmem>>, vector<16x32xf32>
      %212 = arith.addf %210, %211 : vector<16x32xf32>
      %c0_87 = arith.constant 0 : index
      %c0_88 = arith.constant 0 : index
      %213 = vector.load %arg21[%c0_87, %c0_88] : memref<16x32xf32, #tpu.memory_space<vmem>>, vector<16x32xf32>
      tpu.vector_store %arg21[%c0_87, %c0_88], %212 {strides = array<i32>} : memref<16x32xf32, #tpu.memory_space<vmem>>, vector<16x32xf32>,
    } else {
    }
    %c0 = arith.constant 0 : index
    %c0_1 = arith.constant 0 : index
    %3 = vector.load %arg21[%c0, %c0_1] : memref<16x32xf32, #tpu.memory_space<vmem>>, vector<16x32xf32>
    %cst = arith.constant dense<0.000000e+00> : vector<16xf32>
    %4 = vector.multi_reduction <add>, %3, %cst [1] : vector<16x32xf32> to vector<16xf32>
    %5 = vector.shape_cast %4 : vector<16xf32> to vector<16x1xf32>
    %cst_2 = arith.constant 3.200000e+01 : f32
    %6 = vector.broadcast %cst_2 : f32 to vector<16x1xf32>
    %7 = arith.divf %5, %6 : vector<16x1xf32>
    %8 = vector.broadcast %7 : vector<16x1xf32> to vector<16x32xf32>
    %9 = arith.subf %3, %8 : vector<16x32xf32>
    %10 = arith.mulf %9, %9 : vector<16x32xf32>
    %cst_3 = arith.constant dense<0.000000e+00> : vector<16xf32>
    %11 = vector.multi_reduction <add>, %10, %cst_3 [1] : vector<16x32xf32> to vector<16xf32>
    %12 = vector.shape_cast %11 : vector<16xf32> to vector<16x1xf32>
    %cst_4 = arith.constant 3.200000e+01 : f32
    %13 = vector.broadcast %cst_4 : f32 to vector<16x1xf32>
    %14 = arith.divf %12, %13 : vector<16x1xf32>
    %15 = vector.broadcast %7 : vector<16x1xf32> to vector<16x32xf32>
    %16 = arith.subf %3, %15 : vector<16x32xf32>
    %cst_5 = arith.constant 9.99999996E-13 : f32
    %17 = vector.broadcast %cst_5 : f32 to vector<16x1xf32>
    %18 = arith.addf %14, %17 : vector<16x1xf32>
    %19 = math.rsqrt %18 : vector<16x1xf32>
    %20 = vector.broadcast %19 : vector<16x1xf32> to vector<16x32xf32>
    %21 = arith.mulf %16, %20 : vector<16x32xf32>
    %c0_6 = arith.constant 0 : index
    %c0_7 = arith.constant 0 : index
    %c0_8 = arith.constant 0 : index
    %22 = vector.load %arg8[%c0_6, %c0_7, %c0_8] : memref<1x1x32xf32, #tpu.memory_space<vmem>>, vector<1x1x32xf32>
    %23 = vector.shape_cast %22 : vector<1x1x32xf32> to vector<1x32xf32>
    %24 = vector.broadcast %23 : vector<1x32xf32> to vector<16x32xf32>
    %25 = arith.mulf %21, %24 : vector<16x32xf32>
    %c0_9 = arith.constant 0 : index
    %c0_10 = arith.constant 0 : index
    %c0_11 = arith.constant 0 : index
    %26 = vector.load %arg9[%c0_9, %c0_10, %c0_11] : memref<1x1x32xf32, #tpu.memory_space<vmem>>, vector<1x1x32xf32>
    %27 = vector.shape_cast %26 : vector<1x1x32xf32> to vector<1x32xf32>
    %28 = vector.broadcast %27 : vector<1x32xf32> to vector<16x32xf32>
    %29 = arith.addf %25, %28 : vector<16x32xf32>
    %30 = arith.truncf %29 : vector<16x32xf32> to vector<16x32xbf16>
    %c0_12 = arith.constant 0 : index
    %c0_13 = arith.constant 0 : index
    %c0_14 = arith.constant 0 : index
    %31 = vector.load %arg10[%c0_12, %c0_13, %c0_14] : memref<1x32x96xbf16, #tpu.memory_space<vmem>>, vector<1x32x96xbf16>
    %32 = vector.shape_cast %31 : vector<1x32x96xbf16> to vector<32x96xbf16>
    %cst_15 = arith.constant dense<0.000000e+00> : vector<16x96xf32>
    %33 = tpu.matmul %30, %32, %cst_15 {dimension_numbers = #tpu.dot_dimension_numbers<[1], [0], [0], [1], [0, 0, 1, 1], [], []>} : vector<16x32xbf16>, vector<32x96xbf16>, vector<16x96xf32> -> vector<16x96xf32>
    %c0_16 = arith.constant 0 : index
    %c0_17 = arith.constant 0 : index
    %c0_18 = arith.constant 0 : index
    %34 = vector.load %arg11[%c0_16, %c0_17, %c0_18] : memref<1x1x96xf32, #tpu.memory_space<vmem>>, vector<1x1x96xf32>
    %35 = vector.shape_cast %34 : vector<1x1x96xf32> to vector<1x96xf32>
    %36 = vector.broadcast %35 : vector<1x96xf32> to vector<16x96xf32>
    %37 = arith.addf %33, %36 : vector<16x96xf32>
    %38 = vector.shape_cast %37 : vector<16x96xf32> to vector<2x8x96xf32>
    %39 = tpu.iota {dimensions = array<i32: 2>} : vector<1x1x8xi32>
    %c5_i32 = arith.constant 5 : i32
    %40 = vector.broadcast %c5_i32 : i32 to vector<1x1x8xi32>
    %41 = arith.cmpi slt, %39, %40 : vector<1x1x8xi32>
    %cst_19 = arith.constant 0.000000e+00 : f32
    %cst_20 = arith.constant -1.000000e+30 : f32
    %42 = vector.broadcast %cst_19 : f32 to vector<1x1x8xf32>
    %43 = vector.broadcast %cst_20 : f32 to vector<1x1x8xf32>
    %44 = arith.select %41, %42, %43 : vector<1x1x8xi1>, vector<1x1x8xf32>
    %45 = vector.extract_strided_slice %38 {offsets = [0, 0, 0], sizes = [2, 8, 8], strides = [1, 1, 1]} : vector<2x8x96xf32> to vector<2x8x8xf32>
    %cst_21 = arith.constant 0.353553385 : f32
    %46 = vector.broadcast %cst_21 : f32 to vector<2x8x8xf32>
    %47 = arith.mulf %45, %46 : vector<2x8x8xf32>
    %48 = arith.truncf %47 : vector<2x8x8xf32> to vector<2x8x8xbf16>
    %49 = vector.extract_strided_slice %38 {offsets = [0, 0, 32], sizes = [2, 8, 8], strides = [1, 1, 1]} : vector<2x8x96xf32> to vector<2x8x8xf32>
    %50 = arith.truncf %49 : vector<2x8x8xf32> to vector<2x8x8xbf16>
    %51 = vector.extract_strided_slice %38 {offsets = [0, 0, 64], sizes = [2, 8, 8], strides = [1, 1, 1]} : vector<2x8x96xf32> to vector<2x8x8xf32>
    %52 = arith.truncf %51 : vector<2x8x8xf32> to vector<2x8x8xbf16>
    "tpu.trace_start"() <{level = 10 : i32, message = "bqd,bkd->bqk"}> : () -> ()
    %cst_22 = arith.constant dense<0.000000e+00> : vector<2x8x8xf32>
    %53 = tpu.matmul %48, %50, %cst_22 {dimension_numbers = #tpu.dot_dimension_numbers<[2], [2], [1], [1], [0, 0, 0, 1, 1, 1], [0], [0]>} : vector<2x8x8xbf16>, vector<2x8x8xbf16>, vector<2x8x8xf32> -> vector<2x8x8xf32>
    "tpu.trace_stop"() : () -> ()
    %54 = vector.broadcast %44 : vector<1x1x8xf32> to vector<2x8x8xf32>
    %55 = arith.addf %53, %54 : vector<2x8x8xf32>
    %cst_23 = arith.constant dense<0xFF800000> : vector<2x8xf32>
    %56 = vector.multi_reduction <maximumf>, %55, %cst_23 [2] : vector<2x8x8xf32> to vector<2x8xf32>
    %57 = vector.shape_cast %56 : vector<2x8xf32> to vector<2x8x1xf32>
    %58 = vector.broadcast %57 : vector<2x8x1xf32> to vector<2x8x8xf32>
    %59 = arith.subf %55, %58 : vector<2x8x8xf32>
    %60 = math.exp %59 : vector<2x8x8xf32>
    %cst_24 = arith.constant dense<0.000000e+00> : vector<2x8xf32>
    %61 = vector.multi_reduction <add>, %60, %cst_24 [2] : vector<2x8x8xf32> to vector<2x8xf32>
    %62 = vector.shape_cast %61 : vector<2x8xf32> to vector<2x8x1xf32>
    %63 = tpu.reciprocal %62 {approx = true} : vector<2x8x1xf32> -> vector<2x8x1xf32>
    %64 = vector.broadcast %63 : vector<2x8x1xf32> to vector<2x8x8xf32>
    %65 = arith.mulf %60, %64 : vector<2x8x8xf32>
    %66 = arith.truncf %65 : vector<2x8x8xf32> to vector<2x8x8xbf16>
    "tpu.trace_start"() <{level = 10 : i32, message = "bqk,bkd->bqd"}> : () -> ()
    %cst_25 = arith.constant dense<0.000000e+00> : vector<2x8x8xf32>
    %67 = tpu.matmul %66, %52, %cst_25 {dimension_numbers = #tpu.dot_dimension_numbers<[2], [1], [1], [2], [0, 0, 0, 1, 1, 2], [0], [0]>} : vector<2x8x8xbf16>, vector<2x8x8xbf16>, vector<2x8x8xf32> -> vector<2x8x8xf32>
    "tpu.trace_stop"() : () -> ()
    %68 = vector.extract_strided_slice %38 {offsets = [0, 0, 8], sizes = [2, 8, 8], strides = [1, 1, 1]} : vector<2x8x96xf32> to vector<2x8x8xf32>
    %cst_26 = arith.constant 0.353553385 : f32
    %69 = vector.broadcast %cst_26 : f32 to vector<2x8x8xf32>
    %70 = arith.mulf %68, %69 : vector<2x8x8xf32>
    %71 = arith.truncf %70 : vector<2x8x8xf32> to vector<2x8x8xbf16>
    %72 = vector.extract_strided_slice %38 {offsets = [0, 0, 40], sizes = [2, 8, 8], strides = [1, 1, 1]} : vector<2x8x96xf32> to vector<2x8x8xf32>
    %73 = arith.truncf %72 : vector<2x8x8xf32> to vector<2x8x8xbf16>
    %74 = vector.extract_strided_slice %38 {offsets = [0, 0, 72], sizes = [2, 8, 8], strides = [1, 1, 1]} : vector<2x8x96xf32> to vector<2x8x8xf32>
    %75 = arith.truncf %74 : vector<2x8x8xf32> to vector<2x8x8xbf16>
    "tpu.trace_start"() <{level = 10 : i32, message = "bqd,bkd->bqk"}> : () -> ()
    %cst_27 = arith.constant dense<0.000000e+00> : vector<2x8x8xf32>
    %76 = tpu.matmul %71, %73, %cst_27 {dimension_numbers = #tpu.dot_dimension_numbers<[2], [2], [1], [1], [0, 0, 0, 1, 1, 1], [0], [0]>} : vector<2x8x8xbf16>, vector<2x8x8xbf16>, vector<2x8x8xf32> -> vector<2x8x8xf32>
    "tpu.trace_stop"() : () -> ()
    %77 = vector.broadcast %44 : vector<1x1x8xf32> to vector<2x8x8xf32>
    %78 = arith.addf %76, %77 : vector<2x8x8xf32>
    %cst_28 = arith.constant dense<0xFF800000> : vector<2x8xf32>
    %79 = vector.multi_reduction <maximumf>, %78, %cst_28 [2] : vector<2x8x8xf32> to vector<2x8xf32>
    %80 = vector.shape_cast %79 : vector<2x8xf32> to vector<2x8x1xf32>
    %81 = vector.broadcast %80 : vector<2x8x1xf32> to vector<2x8x8xf32>
    %82 = arith.subf %78, %81 : vector<2x8x8xf32>
    %83 = math.exp %82 : vector<2x8x8xf32>
    %cst_29 = arith.constant dense<0.000000e+00> : vector<2x8xf32>
    %84 = vector.multi_reduction <add>, %83, %cst_29 [2] : vector<2x8x8xf32> to vector<2x8xf32>
    %85 = vector.shape_cast %84 : vector<2x8xf32> to vector<2x8x1xf32>
    %86 = tpu.reciprocal %85 {approx = true} : vector<2x8x1xf32> -> vector<2x8x1xf32>
    %87 = vector.broadcast %86 : vector<2x8x1xf32> to vector<2x8x8xf32>
    %88 = arith.mulf %83, %87 : vector<2x8x8xf32>
    %89 = arith.truncf %88 : vector<2x8x8xf32> to vector<2x8x8xbf16>
    "tpu.trace_start"() <{level = 10 : i32, message = "bqk,bkd->bqd"}> : () -> ()
    %cst_30 = arith.constant dense<0.000000e+00> : vector<2x8x8xf32>
    %90 = tpu.matmul %89, %75, %cst_30 {dimension_numbers = #tpu.dot_dimension_numbers<[2], [1], [1], [2], [0, 0, 0, 1, 1, 2], [0], [0]>} : vector<2x8x8xbf16>, vector<2x8x8xbf16>, vector<2x8x8xf32> -> vector<2x8x8xf32>
    "tpu.trace_stop"() : () -> ()
    %91 = vector.extract_strided_slice %38 {offsets = [0, 0, 16], sizes = [2, 8, 8], strides = [1, 1, 1]} : vector<2x8x96xf32> to vector<2x8x8xf32>
    %cst_31 = arith.constant 0.353553385 : f32
    %92 = vector.broadcast %cst_31 : f32 to vector<2x8x8xf32>
    %93 = arith.mulf %91, %92 : vector<2x8x8xf32>
    %94 = arith.truncf %93 : vector<2x8x8xf32> to vector<2x8x8xbf16>
    %95 = vector.extract_strided_slice %38 {offsets = [0, 0, 48], sizes = [2, 8, 8], strides = [1, 1, 1]} : vector<2x8x96xf32> to vector<2x8x8xf32>
    %96 = arith.truncf %95 : vector<2x8x8xf32> to vector<2x8x8xbf16>
    %97 = vector.extract_strided_slice %38 {offsets = [0, 0, 80], sizes = [2, 8, 8], strides = [1, 1, 1]} : vector<2x8x96xf32> to vector<2x8x8xf32>
    %98 = arith.truncf %97 : vector<2x8x8xf32> to vector<2x8x8xbf16>
    "tpu.trace_start"() <{level = 10 : i32, message = "bqd,bkd->bqk"}> : () -> ()
    %cst_32 = arith.constant dense<0.000000e+00> : vector<2x8x8xf32>
    %99 = tpu.matmul %94, %96, %cst_32 {dimension_numbers = #tpu.dot_dimension_numbers<[2], [2], [1], [1], [0, 0, 0, 1, 1, 1], [0], [0]>} : vector<2x8x8xbf16>, vector<2x8x8xbf16>, vector<2x8x8xf32> -> vector<2x8x8xf32>
    "tpu.trace_stop"() : () -> ()
    %100 = vector.broadcast %44 : vector<1x1x8xf32> to vector<2x8x8xf32>
    %101 = arith.addf %99, %100 : vector<2x8x8xf32>
    %cst_33 = arith.constant dense<0xFF800000> : vector<2x8xf32>
    %102 = vector.multi_reduction <maximumf>, %101, %cst_33 [2] : vector<2x8x8xf32> to vector<2x8xf32>
    %103 = vector.shape_cast %102 : vector<2x8xf32> to vector<2x8x1xf32>
    %104 = vector.broadcast %103 : vector<2x8x1xf32> to vector<2x8x8xf32>
    %105 = arith.subf %101, %104 : vector<2x8x8xf32>
    %106 = math.exp %105 : vector<2x8x8xf32>
    %cst_34 = arith.constant dense<0.000000e+00> : vector<2x8xf32>
    %107 = vector.multi_reduction <add>, %106, %cst_34 [2] : vector<2x8x8xf32> to vector<2x8xf32>
    %108 = vector.shape_cast %107 : vector<2x8xf32> to vector<2x8x1xf32>
    %109 = tpu.reciprocal %108 {approx = true} : vector<2x8x1xf32> -> vector<2x8x1xf32>
    %110 = vector.broadcast %109 : vector<2x8x1xf32> to vector<2x8x8xf32>
    %111 = arith.mulf %106, %110 : vector<2x8x8xf32>
    %112 = arith.truncf %111 : vector<2x8x8xf32> to vector<2x8x8xbf16>
    "tpu.trace_start"() <{level = 10 : i32, message = "bqk,bkd->bqd"}> : () -> ()
    %cst_35 = arith.constant dense<0.000000e+00> : vector<2x8x8xf32>
    %113 = tpu.matmul %112, %98, %cst_35 {dimension_numbers = #tpu.dot_dimension_numbers<[2], [1], [1], [2], [0, 0, 0, 1, 1, 2], [0], [0]>} : vector<2x8x8xbf16>, vector<2x8x8xbf16>, vector<2x8x8xf32> -> vector<2x8x8xf32>
    "tpu.trace_stop"() : () -> ()
    %114 = vector.extract_strided_slice %38 {offsets = [0, 0, 24], sizes = [2, 8, 8], strides = [1, 1, 1]} : vector<2x8x96xf32> to vector<2x8x8xf32>
    %cst_36 = arith.constant 0.353553385 : f32
    %115 = vector.broadcast %cst_36 : f32 to vector<2x8x8xf32>
    %116 = arith.mulf %114, %115 : vector<2x8x8xf32>
    %117 = arith.truncf %116 : vector<2x8x8xf32> to vector<2x8x8xbf16>
    %118 = vector.extract_strided_slice %38 {offsets = [0, 0, 56], sizes = [2, 8, 8], strides = [1, 1, 1]} : vector<2x8x96xf32> to vector<2x8x8xf32>
    %119 = arith.truncf %118 : vector<2x8x8xf32> to vector<2x8x8xbf16>
    %120 = vector.extract_strided_slice %38 {offsets = [0, 0, 88], sizes = [2, 8, 8], strides = [1, 1, 1]} : vector<2x8x96xf32> to vector<2x8x8xf32>
    %121 = arith.truncf %120 : vector<2x8x8xf32> to vector<2x8x8xbf16>
    "tpu.trace_start"() <{level = 10 : i32, message = "bqd,bkd->bqk"}> : () -> ()
    %cst_37 = arith.constant dense<0.000000e+00> : vector<2x8x8xf32>
    %122 = tpu.matmul %117, %119, %cst_37 {dimension_numbers = #tpu.dot_dimension_numbers<[2], [2], [1], [1], [0, 0, 0, 1, 1, 1], [0], [0]>} : vector<2x8x8xbf16>, vector<2x8x8xbf16>, vector<2x8x8xf32> -> vector<2x8x8xf32>
    "tpu.trace_stop"() : () -> ()
    %123 = vector.broadcast %44 : vector<1x1x8xf32> to vector<2x8x8xf32>
    %124 = arith.addf %122, %123 : vector<2x8x8xf32>
    %cst_38 = arith.constant dense<0xFF800000> : vector<2x8xf32>
    %125 = vector.multi_reduction <maximumf>, %124, %cst_38 [2] : vector<2x8x8xf32> to vector<2x8xf32>
    %126 = vector.shape_cast %125 : vector<2x8xf32> to vector<2x8x1xf32>
    %127 = vector.broadcast %126 : vector<2x8x1xf32> to vector<2x8x8xf32>
    %128 = arith.subf %124, %127 : vector<2x8x8xf32>
    %129 = math.exp %128 : vector<2x8x8xf32>
    %cst_39 = arith.constant dense<0.000000e+00> : vector<2x8xf32>
    %130 = vector.multi_reduction <add>, %129, %cst_39 [2] : vector<2x8x8xf32> to vector<2x8xf32>
    %131 = vector.shape_cast %130 : vector<2x8xf32> to vector<2x8x1xf32>
    %132 = tpu.reciprocal %131 {approx = true} : vector<2x8x1xf32> -> vector<2x8x1xf32>
    %133 = vector.broadcast %132 : vector<2x8x1xf32> to vector<2x8x8xf32>
    %134 = arith.mulf %129, %133 : vector<2x8x8xf32>
    %135 = arith.truncf %134 : vector<2x8x8xf32> to vector<2x8x8xbf16>
    "tpu.trace_start"() <{level = 10 : i32, message = "bqk,bkd->bqd"}> : () -> ()
    %cst_40 = arith.constant dense<0.000000e+00> : vector<2x8x8xf32>
    %136 = tpu.matmul %135, %121, %cst_40 {dimension_numbers = #tpu.dot_dimension_numbers<[2], [1], [1], [2], [0, 0, 0, 1, 1, 2], [0], [0]>} : vector<2x8x8xbf16>, vector<2x8x8xbf16>, vector<2x8x8xf32> -> vector<2x8x8xf32>
    "tpu.trace_stop"() : () -> ()
    %137 = tpu.concatenate %67, %90, %113, %136 in 2 : vector<2x8x8xf32>, vector<2x8x8xf32>, vector<2x8x8xf32>, vector<2x8x8xf32> -> vector<2x8x32xf32>
    %138 = vector.shape_cast %137 : vector<2x8x32xf32> to vector<16x32xf32>
    %139 = arith.truncf %138 : vector<16x32xf32> to vector<16x32xbf16>
    %c0_41 = arith.constant 0 : index
    %c0_42 = arith.constant 0 : index
    %c0_43 = arith.constant 0 : index
    %140 = vector.load %arg12[%c0_41, %c0_42, %c0_43] : memref<1x32x32xbf16, #tpu.memory_space<vmem>>, vector<1x32x32xbf16>
    %141 = vector.shape_cast %140 : vector<1x32x32xbf16> to vector<32x32xbf16>
    %cst_44 = arith.constant dense<0.000000e+00> : vector<16x32xf32>
    %142 = tpu.matmul %139, %141, %cst_44 {dimension_numbers = #tpu.dot_dimension_numbers<[1], [0], [0], [1], [0, 0, 1, 1], [], []>} : vector<16x32xbf16>, vector<32x32xbf16>, vector<16x32xf32> -> vector<16x32xf32>
    %c0_45 = arith.constant 0 : index
    %c0_46 = arith.constant 0 : index
    %c0_47 = arith.constant 0 : index
    %143 = vector.load %arg13[%c0_45, %c0_46, %c0_47] : memref<1x1x32xf32, #tpu.memory_space<vmem>>, vector<1x1x32xf32>
    %144 = vector.shape_cast %143 : vector<1x1x32xf32> to vector<1x32xf32>
    %145 = vector.broadcast %144 : vector<1x32xf32> to vector<16x32xf32>
    %146 = arith.addf %142, %145 : vector<16x32xf32>
    %147 = arith.addf %3, %146 : vector<16x32xf32>
    %cst_48 = arith.constant dense<0.000000e+00> : vector<16xf32>
    %148 = vector.multi_reduction <add>, %147, %cst_48 [1] : vector<16x32xf32> to vector<16xf32>
    %149 = vector.shape_cast %148 : vector<16xf32> to vector<16x1xf32>
    %cst_49 = arith.constant 3.200000e+01 : f32
    %150 = vector.broadcast %cst_49 : f32 to vector<16x1xf32>
    %151 = arith.divf %149, %150 : vector<16x1xf32>
    %152 = vector.broadcast %151 : vector<16x1xf32> to vector<16x32xf32>
    %153 = arith.subf %147, %152 : vector<16x32xf32>
    %154 = arith.mulf %153, %153 : vector<16x32xf32>
    %cst_50 = arith.constant dense<0.000000e+00> : vector<16xf32>
    %155 = vector.multi_reduction <add>, %154, %cst_50 [1] : vector<16x32xf32> to vector<16xf32>
    %156 = vector.shape_cast %155 : vector<16xf32> to vector<16x1xf32>
    %cst_51 = arith.constant 3.200000e+01 : f32
    %157 = vector.broadcast %cst_51 : f32 to vector<16x1xf32>
    %158 = arith.divf %156, %157 : vector<16x1xf32>
    %159 = vector.broadcast %151 : vector<16x1xf32> to vector<16x32xf32>
    %160 = arith.subf %147, %159 : vector<16x32xf32>
    %cst_52 = arith.constant 9.99999996E-13 : f32
    %161 = vector.broadcast %cst_52 : f32 to vector<16x1xf32>
    %162 = arith.addf %158, %161 : vector<16x1xf32>
    %163 = math.rsqrt %162 : vector<16x1xf32>
    %164 = vector.broadcast %163 : vector<16x1xf32> to vector<16x32xf32>
    %165 = arith.mulf %160, %164 : vector<16x32xf32>
    %c0_53 = arith.constant 0 : index
    %c0_54 = arith.constant 0 : index
    %c0_55 = arith.constant 0 : index
    %166 = vector.load %arg14[%c0_53, %c0_54, %c0_55] : memref<1x1x32xf32, #tpu.memory_space<vmem>>, vector<1x1x32xf32>
    %167 = vector.shape_cast %166 : vector<1x1x32xf32> to vector<1x32xf32>
    %168 = vector.broadcast %167 : vector<1x32xf32> to vector<16x32xf32>
    %169 = arith.mulf %165, %168 : vector<16x32xf32>
    %c0_56 = arith.constant 0 : index
    %c0_57 = arith.constant 0 : index
    %c0_58 = arith.constant 0 : index
    %170 = vector.load %arg15[%c0_56, %c0_57, %c0_58] : memref<1x1x32xf32, #tpu.memory_space<vmem>>, vector<1x1x32xf32>
    %171 = vector.shape_cast %170 : vector<1x1x32xf32> to vector<1x32xf32>
    %172 = vector.broadcast %171 : vector<1x32xf32> to vector<16x32xf32>
    %173 = arith.addf %169, %172 : vector<16x32xf32>
    %174 = arith.truncf %173 : vector<16x32xf32> to vector<16x32xbf16>
    %c0_59 = arith.constant 0 : index
    %c0_60 = arith.constant 0 : index
    %c0_61 = arith.constant 0 : index
    %175 = vector.load %arg16[%c0_59, %c0_60, %c0_61] : memref<1x32x128xbf16, #tpu.memory_space<vmem>>, vector<1x32x128xbf16>
    %176 = vector.shape_cast %175 : vector<1x32x128xbf16> to vector<32x128xbf16>
    %cst_62 = arith.constant dense<0.000000e+00> : vector<16x128xf32>
    %177 = tpu.matmul %174, %176, %cst_62 {dimension_numbers = #tpu.dot_dimension_numbers<[1], [0], [0], [1], [0, 0, 1, 1], [], []>} : vector<16x32xbf16>, vector<32x128xbf16>, vector<16x128xf32> -> vector<16x128xf32>
    %c0_63 = arith.constant 0 : index
    %c0_64 = arith.constant 0 : index
    %c0_65 = arith.constant 0 : index
    %178 = vector.load %arg17[%c0_63, %c0_64, %c0_65] : memref<1x1x128xf32, #tpu.memory_space<vmem>>, vector<1x1x128xf32>
    %179 = vector.shape_cast %178 : vector<1x1x128xf32> to vector<1x128xf32>
    %180 = vector.broadcast %179 : vector<1x128xf32> to vector<16x128xf32>
    %181 = arith.addf %177, %180 : vector<16x128xf32>
    %182 = arith.mulf %181, %181 : vector<16x128xf32>
    %183 = arith.mulf %181, %182 : vector<16x128xf32>
    %cst_66 = arith.constant 4.471500e-02 : f32
    %184 = vector.broadcast %cst_66 : f32 to vector<16x128xf32>
    %185 = arith.mulf %184, %183 : vector<16x128xf32>
    %186 = arith.addf %181, %185 : vector<16x128xf32>
    %cst_67 = arith.constant 0.797884583 : f32
    %187 = vector.broadcast %cst_67 : f32 to vector<16x128xf32>
    %188 = arith.mulf %187, %186 : vector<16x128xf32>
    %189 = math.tanh %188 : vector<16x128xf32>
    %cst_68 = arith.constant 1.000000e+00 : f32
    %190 = vector.broadcast %cst_68 : f32 to vector<16x128xf32>
    %191 = arith.addf %190, %189 : vector<16x128xf32>
    %cst_69 = arith.constant 5.000000e-01 : f32
    %192 = vector.broadcast %cst_69 : f32 to vector<16x128xf32>
    %193 = arith.mulf %192, %191 : vector<16x128xf32>
    %194 = arith.mulf %181, %193 : vector<16x128xf32>
    %195 = arith.truncf %194 : vector<16x128xf32> to vector<16x128xbf16>
    %c0_70 = arith.constant 0 : index
    %c0_71 = arith.constant 0 : index
    %c0_72 = arith.constant 0 : index
    %196 = vector.load %arg18[%c0_70, %c0_71, %c0_72] : memref<1x128x32xbf16, #tpu.memory_space<vmem>>, vector<1x128x32xbf16>
    %197 = vector.shape_cast %196 : vector<1x128x32xbf16> to vector<128x32xbf16>
    %cst_73 = arith.constant dense<0.000000e+00> : vector<16x32xf32>
    %198 = tpu.matmul %195, %197, %cst_73 {dimension_numbers = #tpu.dot_dimension_numbers<[1], [0], [0], [1], [0, 0, 1, 1], [], []>} : vector<16x128xbf16>, vector<128x32xbf16>, vector<16x32xf32> -> vector<16x32xf32>
    %c0_74 = arith.constant 0 : index
    %c0_75 = arith.constant 0 : index
    %c0_76 = arith.constant 0 : index
    %199 = vector.load %arg19[%c0_74, %c0_75, %c0_76] : memref<1x1x32xf32, #tpu.memory_space<vmem>>, vector<1x1x32xf32>
    %200 = vector.shape_cast %199 : vector<1x1x32xf32> to vector<1x32xf32>
    %201 = vector.broadcast %200 : vector<1x32xf32> to vector<16x32xf32>
    %202 = arith.addf %198, %201 : vector<16x32xf32>
    %203 = arith.addf %147, %202 : vector<16x32xf32>
    %c0_77 = arith.constant 0 : index
    %c0_78 = arith.constant 0 : index
    %204 = vector.load %arg21[%c0_77, %c0_78] : memref<16x32xf32, #tpu.memory_space<vmem>>, vector<16x32xf32>
    tpu.vector_store %arg21[%c0_77, %c0_78], %203 {strides = array<i32>} : memref<16x32xf32, #tpu.memory_space<vmem>>, vector<16x32xf32>,
    %c1_i32 = arith.constant 1 : i32
    %205 = arith.cmpi eq, %arg0, %c1_i32 : i32
    %206 = arith.extui %205 : i1 to i32
    %c0_i32_79 = arith.constant 0 : i32
    %207 = arith.cmpi ne, %206, %c0_i32_79 : i32
    scf.if %207 {
      %208 = vector.shape_cast %203 : vector<16x32xf32> to vector<2x8x32xf32>
      %209 = vector.extract_strided_slice %208 {offsets = [0, 0, 0], sizes = [2, 1, 32], strides = [1, 1, 1]} : vector<2x8x32xf32> to vector<2x1x32xf32>
      %210 = vector.shape_cast %209 : vector<2x1x32xf32> to vector<2x32xf32>
      %cst_80 = arith.constant dense<0.000000e+00> : vector<2xf32>
      %211 = vector.multi_reduction <add>, %210, %cst_80 [1] : vector<2x32xf32> to vector<2xf32>
      %212 = vector.shape_cast %211 : vector<2xf32> to vector<2x1xf32>
      %cst_81 = arith.constant 3.200000e+01 : f32
      %213 = vector.broadcast %cst_81 : f32 to vector<2x1xf32>
      %214 = arith.divf %212, %213 : vector<2x1xf32>
      %215 = vector.broadcast %214 : vector<2x1xf32> to vector<2x32xf32>
      %216 = arith.subf %210, %215 : vector<2x32xf32>
      %217 = arith.mulf %216, %216 : vector<2x32xf32>
      %cst_82 = arith.constant dense<0.000000e+00> : vector<2xf32>
      %218 = vector.multi_reduction <add>, %217, %cst_82 [1] : vector<2x32xf32> to vector<2xf32>
      %219 = vector.shape_cast %218 : vector<2xf32> to vector<2x1xf32>
      %cst_83 = arith.constant 3.200000e+01 : f32
      %220 = vector.broadcast %cst_83 : f32 to vector<2x1xf32>
      %221 = arith.divf %219, %220 : vector<2x1xf32>
      %222 = vector.broadcast %214 : vector<2x1xf32> to vector<2x32xf32>
      %223 = arith.subf %210, %222 : vector<2x32xf32>
      %cst_84 = arith.constant 9.99999996E-13 : f32
      %224 = vector.broadcast %cst_84 : f32 to vector<2x1xf32>
      %225 = arith.addf %221, %224 : vector<2x1xf32>
      %226 = math.rsqrt %225 : vector<2x1xf32>
      %227 = vector.broadcast %226 : vector<2x1xf32> to vector<2x32xf32>
      %228 = arith.mulf %223, %227 : vector<2x32xf32>
      %c0_85 = arith.constant 0 : index
      %c0_86 = arith.constant 0 : index
      %229 = vector.load %arg4[%c0_85, %c0_86] : memref<1x32xf32, #tpu.memory_space<vmem>>, vector<1x32xf32>
      %230 = vector.broadcast %229 : vector<1x32xf32> to vector<2x32xf32>
      %231 = arith.mulf %228, %230 : vector<2x32xf32>
      %c0_87 = arith.constant 0 : index
      %c0_88 = arith.constant 0 : index
      %232 = vector.load %arg5[%c0_87, %c0_88] : memref<1x32xf32, #tpu.memory_space<vmem>>, vector<1x32xf32>
      %233 = vector.broadcast %232 : vector<1x32xf32> to vector<2x32xf32>
      %234 = arith.addf %231, %233 : vector<2x32xf32>
      %235 = arith.truncf %234 : vector<2x32xf32> to vector<2x32xbf16>
      %c0_89 = arith.constant 0 : index
      %c0_90 = arith.constant 0 : index
      %236 = vector.load %arg6[%c0_89, %c0_90] : memref<32x128xbf16, #tpu.memory_space<vmem>>, vector<32x128xbf16>
      %cst_91 = arith.constant dense<0.000000e+00> : vector<2x128xf32>
      %237 = tpu.matmul %235, %236, %cst_91 {dimension_numbers = #tpu.dot_dimension_numbers<[1], [0], [0], [1], [0, 0, 1, 1], [], []>} : vector<2x32xbf16>, vector<32x128xbf16>, vector<2x128xf32> -> vector<2x128xf32>
      %c0_92 = arith.constant 0 : index
      %c0_93 = arith.constant 0 : index
      %238 = vector.load %arg7[%c0_92, %c0_93] : memref<1x128xf32, #tpu.memory_space<vmem>>, vector<1x128xf32>
      %239 = vector.broadcast %238 : vector<1x128xf32> to vector<2x128xf32>
      %240 = arith.addf %237, %239 : vector<2x128xf32>
      %cst_94 = arith.constant 0.000000e+00 : f32
      %241 = vector.broadcast %cst_94 : f32 to vector<6x128xf32>
      %242 = tpu.concatenate %240, %241 in 0 : vector<2x128xf32>, vector<6x128xf32> -> vector<8x128xf32>
      %c0_95 = arith.constant 0 : index
      %c0_96 = arith.constant 0 : index
      %243 = vector.load %arg20[%c0_95, %c0_96] : memref<8x128xf32, #tpu.memory_space<vmem>>, vector<8x128xf32>
      tpu.vector_store %arg20[%c0_95, %c0_96], %242 {strides = array<i32>} : memref<8x128xf32, #tpu.memory_space<vmem>>, vector<8x128xf32>,
    } else {
    }
    return
  }
  func.func @transform_0(%arg0: i32) -> (i32, i32) {
    %c0_i32 = arith.constant 0 : i32
    %c0_i32_0 = arith.constant 0 : i32
    %c0_i32_1 = arith.constant 0 : i32
    return %c0_i32, %c0_i32_0 : i32, i32
  }
  func.func @transform_1(%arg0: i32) -> (i32, i32) {
    %c0_i32 = arith.constant 0 : i32
    %c0_i32_0 = arith.constant 0 : i32
    %c0_i32_1 = arith.constant 0 : i32
    return %c0_i32, %c0_i32_0 : i32, i32
  }
  func.func @transform_2(%arg0: i32) -> (i32, i32) {
    %c0_i32 = arith.constant 0 : i32
    %c0_i32_0 = arith.constant 0 : i32
    %c0_i32_1 = arith.constant 0 : i32
    return %c0_i32, %c0_i32_0 : i32, i32
  }
  func.func @transform_3(%arg0: i32) -> (i32, i32) {
    %c0_i32 = arith.constant 0 : i32
    %c0_i32_0 = arith.constant 0 : i32
    %c0_i32_1 = arith.constant 0 : i32
    return %c0_i32, %c0_i32_0 : i32, i32
  }
  func.func @transform_4(%arg0: i32) -> (i32, i32) {
    %c0_i32 = arith.constant 0 : i32
    %c0_i32_0 = arith.constant 0 : i32
    %c0_i32_1 = arith.constant 0 : i32
    return %c0_i32, %c0_i32_0 : i32, i32
  }
  func.func @transform_5(%arg0: i32) -> (i32, i32) {
    %c0_i32 = arith.constant 0 : i32
    %c0_i32_0 = arith.constant 0 : i32
    %c0_i32_1 = arith.constant 0 : i32
    return %c0_i32, %c0_i32_0 : i32, i32
  }
  func.func @transform_6(%arg0: i32) -> (i32, i32) {
    %c0_i32 = arith.constant 0 : i32
    %c0_i32_0 = arith.constant 0 : i32
    %c0_i32_1 = arith.constant 0 : i32
    return %c0_i32, %c0_i32_0 : i32, i32
  }
  func.func @transform_7(%arg0: i32) -> (i32, i32, i32) {
    %c0_i32 = arith.constant 0 : i32
    %c0_i32_0 = arith.constant 0 : i32
    %c0_i32_1 = arith.constant 0 : i32
    return %arg0, %c0_i32, %c0_i32_0 : i32, i32, i32
  }
  func.func @transform_8(%arg0: i32) -> (i32, i32, i32) {
    %c0_i32 = arith.constant 0 : i32
    %c0_i32_0 = arith.constant 0 : i32
    %c0_i32_1 = arith.constant 0 : i32
    return %arg0, %c0_i32, %c0_i32_0 : i32, i32, i32
  }
  func.func @transform_9(%arg0: i32) -> (i32, i32, i32) {
    %c0_i32 = arith.constant 0 : i32
    %c0_i32_0 = arith.constant 0 : i32
    %c0_i32_1 = arith.constant 0 : i32
    return %arg0, %c0_i32, %c0_i32_0 : i32, i32, i32
  }
  func.func @transform_10(%arg0: i32) -> (i32, i32, i32) {
    %c0_i32 = arith.constant 0 : i32
    %c0_i32_0 = arith.constant 0 : i32
    %c0_i32_1 = arith.constant 0 : i32
    return %arg0, %c0_i32, %c0_i32_0 : i32, i32, i32
  }
  func.func @transform_11(%arg0: i32) -> (i32, i32, i32) {
    %c0_i32 = arith.constant 0 : i32
    %c0_i32_0 = arith.constant 0 : i32
    %c0_i32_1 = arith.constant 0 : i32
    return %arg0, %c0_i32, %c0_i32_0 : i32, i32, i32
  }
  func.func @transform_12(%arg0: i32) -> (i32, i32, i32) {
    %c0_i32 = arith.constant 0 : i32
    %c0_i32_0 = arith.constant 0 : i32
    %c0_i32_1 = arith.constant 0 : i32
    return %arg0, %c0_i32, %c0_i32_0 : i32, i32, i32
  }
  func.func @transform_13(%arg0: i32) -> (i32, i32, i32) {
    %c0_i32 = arith.constant 0 : i32
    %c0_i32_0 = arith.constant 0 : i32
    %c0_i32_1 = arith.constant 0 : i32
    return %arg0, %c0_i32, %c0_i32_0 : i32, i32, i32
  }
  func.func @transform_14(%arg0: i32) -> (i32, i32, i32) {
    %c0_i32 = arith.constant 0 : i32
    %c0_i32_0 = arith.constant 0 : i32
    %c0_i32_1 = arith.constant 0 : i32
    return %arg0, %c0_i32, %c0_i32_0 : i32, i32, i32
  }
  func.func @transform_15(%arg0: i32) -> (i32, i32, i32) {
    %c0_i32 = arith.constant 0 : i32
    %c0_i32_0 = arith.constant 0 : i32
    %c0_i32_1 = arith.constant 0 : i32
    return %arg0, %c0_i32, %c0_i32_0 : i32, i32, i32
  }
  func.func @transform_16(%arg0: i32) -> (i32, i32, i32) {
    %c0_i32 = arith.constant 0 : i32
    %c0_i32_0 = arith.constant 0 : i32
    %c0_i32_1 = arith.constant 0 : i32
    return %arg0, %c0_i32, %c0_i32_0 : i32, i32, i32
  }
  func.func @transform_17(%arg0: i32) -> (i32, i32, i32) {
    %c0_i32 = arith.constant 0 : i32
    %c0_i32_0 = arith.constant 0 : i32
    %c0_i32_1 = arith.constant 0 : i32
    return %arg0, %c0_i32, %c0_i32_0 : i32, i32, i32
  }
  func.func @transform_18(%arg0: i32) -> (i32, i32, i32) {
    %c0_i32 = arith.constant 0 : i32
    %c0_i32_0 = arith.constant 0 : i32
    %c0_i32_1 = arith.constant 0 : i32
    return %arg0, %c0_i32, %c0_i32_0 : i32, i32, i32
  }
  func.func @transform_19(%arg0: i32) -> (i32, i32) {
    %c0_i32 = arith.constant 0 : i32
    %c0_i32_0 = arith.constant 0 : i32
    %c0_i32_1 = arith.constant 0 : i32
    return %c0_i32, %c0_i32_0 : i32, i32
  }
}

</mosaic_0001>

<llo_original>
// kernel: image_classifier_finetuner_forward.1
$region0: #{image_classifier_finetuner_forward.1}
  #allocation0 [shape = 'u32[]', space=smem, size = 0x4, offset = 0x4, fixed_abs, tag = 'smem constant byte address 0x4 - core index']
  #allocation1 [shape = 'u32[144,128]{1,0:T(1,128)}', space=vmem, size = 0x12000, scoped, tag = 'internal scratch']
  #allocation2 [shape = 'f32[16,32]{1,0:T(8,128)}', space=vmem, size = 0x2000, scoped, tag = 'scratch operand']
  %s0 = inlined_call_operand.vmem [shape: bf16[16,192], index: 0, kind: input, shape index: {}]
  %s1 = inlined_call_operand.vmem [shape: bf16[192,32], index: 1, kind: input, shape index: {}]
  %s2 = inlined_call_operand.vmem [shape: f32[16,32], index: 2, kind: input, shape index: {}]
  %s3 = inlined_call_operand.vmem [shape: f32[1,32], index: 3, kind: input, shape index: {}]
  %s4 = inlined_call_operand.vmem [shape: f32[1,32], index: 4, kind: input, shape index: {}]
  %s5 = inlined_call_operand.vmem [shape: bf16[32,128], index: 5, kind: input, shape index: {}]
  %s6 = inlined_call_operand.vmem [shape: f32[1,128], index: 6, kind: input, shape index: {}]
  %s7 = inlined_call_operand.vmem [shape: f32[2,1,32], index: 7, kind: input, shape index: {}]
  %s8 = inlined_call_operand.vmem [shape: f32[2,1,32], index: 8, kind: input, shape index: {}]
  %s9 = inlined_call_operand.vmem [shape: bf16[2,32,96], index: 9, kind: input, shape index: {}]
  %s10 = inlined_call_operand.vmem [shape: f32[2,1,96], index: 10, kind: input, shape index: {}]
  %s11 = inlined_call_operand.vmem [shape: bf16[2,32,32], index: 11, kind: input, shape index: {}]
  %s12 = inlined_call_operand.vmem [shape: f32[2,1,32], index: 12, kind: input, shape index: {}]
  %s13 = inlined_call_operand.vmem [shape: f32[2,1,32], index: 13, kind: input, shape index: {}]
  %s14 = inlined_call_operand.vmem [shape: f32[2,1,32], index: 14, kind: input, shape index: {}]
  %s15 = inlined_call_operand.vmem [shape: bf16[2,32,128], index: 15, kind: input, shape index: {}]
  %s16 = inlined_call_operand.vmem [shape: f32[2,1,128], index: 16, kind: input, shape index: {}]
  %s17 = inlined_call_operand.vmem [shape: bf16[2,128,32], index: 17, kind: input, shape index: {}]
  %s18 = inlined_call_operand.vmem [shape: f32[2,1,32], index: 18, kind: input, shape index: {}]
  %s19 = inlined_call_operand.vmem [shape: f32[8,128], index: 19, kind: output, shape index: {}]
  %s20 = sld [smem:[#allocation0]]
  $region117: #{image_classifier_finetuner_forward.1} parent=0
    _
  %s22 = ssub.s32 1, %s20
  %s23 = scalar_select 0, %s22, %s20
  loop: start=0, step=1, limit=4
  $region2: #{image_classifier_finetuner_forward.1} parent=0 // loop_pre_header
    _
  $region3: #{image_classifier_finetuner_forward.1} parent=0 // loop_header
    %s25 = sphi 0, %s29
    %p26 = scmp.ge.s32.totalorder %s25, 4
    %s33 = sphi 0, %s33
    %s35 = sphi 0, %s33
    %s36 = sphi 0, %s35
    %s50 = sphi 0, %s36
    %s54 = sphi 0, %s54
    %s56 = sphi 0, %s54
    %s57 = sphi 0, %s56
    %s71 = sphi 0, %s57
    %s75 = sphi 0, %s75
    %s77 = sphi 0, %s75
    %s78 = sphi 0, %s77
    %s92 = sphi 0, %s78
    %s96 = sphi 0, %s96
    %s98 = sphi 0, %s96
    %s99 = sphi 0, %s98
    %s113 = sphi 0, %s99
    %s117 = sphi 0, %s117
    %s119 = sphi 0, %s117
    %s120 = sphi 0, %s119
    %s134 = sphi 0, %s120
    %s138 = sphi 0, %s138
    %s140 = sphi 0, %s138
    %s141 = sphi 0, %s140
    %s155 = sphi 0, %s141
    %s159 = sphi 0, %s159
    %s161 = sphi 0, %s159
    %s162 = sphi 0, %s161
    %s176 = sphi 0, %s162
    %s182 = sphi 0, %s184
    %s185 = sphi 0, %s182
    %s186 = sphi 0, %s185
    %s202 = sphi 0, %s186
    %s208 = sphi 0, %s210
    %s211 = sphi 0, %s208
    %s212 = sphi 0, %s211
    %s228 = sphi 0, %s212
    %s234 = sphi 0, %s236
    %s237 = sphi 0, %s234
    %s238 = sphi 0, %s237
    %s254 = sphi 0, %s238
    %s260 = sphi 0, %s262
    %s263 = sphi 0, %s260
    %s264 = sphi 0, %s263
    %s280 = sphi 0, %s264
    %s286 = sphi 0, %s288
    %s289 = sphi 0, %s286
    %s290 = sphi 0, %s289
    %s306 = sphi 0, %s290
    %s312 = sphi 0, %s314
    %s315 = sphi 0, %s312
    %s316 = sphi 0, %s315
    %s332 = sphi 0, %s316
    %s338 = sphi 0, %s340
    %s341 = sphi 0, %s338
    %s342 = sphi 0, %s341
    %s358 = sphi 0, %s342
    %s364 = sphi 0, %s366
    %s367 = sphi 0, %s364
    %s368 = sphi 0, %s367
    %s384 = sphi 0, %s368
    %s390 = sphi 0, %s392
    %s393 = sphi 0, %s390
    %s394 = sphi 0, %s393
    %s410 = sphi 0, %s394
    %s416 = sphi 0, %s418
    %s419 = sphi 0, %s416
    %s420 = sphi 0, %s419
    %s436 = sphi 0, %s420
    %s442 = sphi 0, %s444
    %s445 = sphi 0, %s442
    %s446 = sphi 0, %s445
    %s462 = sphi 0, %s446
    %s468 = sphi 0, %s470
    %s471 = sphi 0, %s468
    %s472 = sphi 0, %s471
    %s488 = sphi 0, %s472
    %s492 = sphi 0, %s492
    %s494 = sphi 0, %s492
    %s495 = sphi 0, %s494
    %s509 = sphi 0, %s495
  $region4: #{image_classifier_finetuner_forward.1} parent=0 // loop_header_branch
    %28 = sbr.rel (%p26) target = $region8
  $region5: #{image_classifier_finetuner_forward.1} parent=0 // loop_body
    %s30 = ssub.s32 %s25, 1
    %s31 = ssub.s32 %s25, 2
    %s32 = sadd.s32 %s25, 1
    %s34 = sadd.s32 %s33, 1
    %p37 = scmp.eq.s32.totalorder %s25, 1
    %p38 = scmp.ne.s32.totalorder %s33, %s35
    %p39 = scmp.eq.s32.totalorder %s25, 0
    %p40 = por %p38, %p39
    %p41 = scmp.ne.s32.totalorder %s33, %s35
    %p42 = scmp.eq.s32.totalorder %s30, 1
    %p43 = por %p41, %p42
    %p44 = scmp.ne.s32.totalorder %s35, %s36
    %p45 = scmp.eq.s32.totalorder %s30, 0
    %p46 = por %p44, %p45
    %p47 = scmp.ne.s32.totalorder %s35, %s36
    %p48 = scmp.eq.s32.totalorder %s31, 1
    %p49 = por %p47, %p48
    %p51 = scmp.ne.s32.totalorder %s36, %s50
    %p52 = scmp.eq.s32.totalorder %s31, 0
    %p53 = por %p51, %p52
    %s55 = sadd.s32 %s54, 1
    %p58 = scmp.eq.s32.totalorder %s25, 1
    %p59 = scmp.ne.s32.totalorder %s54, %s56
    %p60 = scmp.eq.s32.totalorder %s25, 0
    %p61 = por %p59, %p60
    %p62 = scmp.ne.s32.totalorder %s54, %s56
    %p63 = scmp.eq.s32.totalorder %s30, 1
    %p64 = por %p62, %p63
    %p65 = scmp.ne.s32.totalorder %s56, %s57
    %p66 = scmp.eq.s32.totalorder %s30, 0
    %p67 = por %p65, %p66
    %p68 = scmp.ne.s32.totalorder %s56, %s57
    %p69 = scmp.eq.s32.totalorder %s31, 1
    %p70 = por %p68, %p69
    %p72 = scmp.ne.s32.totalorder %s57, %s71
    %p73 = scmp.eq.s32.totalorder %s31, 0
    %p74 = por %p72, %p73
    %s76 = sadd.s32 %s75, 1
    %p79 = scmp.eq.s32.totalorder %s25, 1
    %p80 = scmp.ne.s32.totalorder %s75, %s77
    %p81 = scmp.eq.s32.totalorder %s25, 0
    %p82 = por %p80, %p81
    %p83 = scmp.ne.s32.totalorder %s75, %s77
    %p84 = scmp.eq.s32.totalorder %s30, 1
    %p85 = por %p83, %p84
    %p86 = scmp.ne.s32.totalorder %s77, %s78
    %p87 = scmp.eq.s32.totalorder %s30, 0
    %p88 = por %p86, %p87
    %p89 = scmp.ne.s32.totalorder %s77, %s78
    %p90 = scmp.eq.s32.totalorder %s31, 1
    %p91 = por %p89, %p90
    %p93 = scmp.ne.s32.totalorder %s78, %s92
    %p94 = scmp.eq.s32.totalorder %s31, 0
    %p95 = por %p93, %p94
    %s97 = sadd.s32 %s96, 1
    %p100 = scmp.eq.s32.totalorder %s25, 1
    %p101 = scmp.ne.s32.totalorder %s96, %s98
    %p102 = scmp.eq.s32.totalorder %s25, 0
    %p103 = por %p101, %p102
    %p104 = scmp.ne.s32.totalorder %s96, %s98
    %p105 = scmp.eq.s32.totalorder %s30, 1
    %p106 = por %p104, %p105
    %p107 = scmp.ne.s32.totalorder %s98, %s99
    %p108 = scmp.eq.s32.totalorder %s30, 0
    %p109 = por %p107, %p108
    %p110 = scmp.ne.s32.totalorder %s98, %s99
    %p111 = scmp.eq.s32.totalorder %s31, 1
    %p112 = por %p110, %p111
    %p114 = scmp.ne.s32.totalorder %s99, %s113
    %p115 = scmp.eq.s32.totalorder %s31, 0
    %p116 = por %p114, %p115
    %s118 = sadd.s32 %s117, 1
    %p121 = scmp.eq.s32.totalorder %s25, 1
    %p122 = scmp.ne.s32.totalorder %s117, %s119
    %p123 = scmp.eq.s32.totalorder %s25, 0
    %p124 = por %p122, %p123
    %p125 = scmp.ne.s32.totalorder %s117, %s119
    %p126 = scmp.eq.s32.totalorder %s30, 1
    %p127 = por %p125, %p126
    %p128 = scmp.ne.s32.totalorder %s119, %s120
    %p129 = scmp.eq.s32.totalorder %s30, 0
    %p130 = por %p128, %p129
    %p131 = scmp.ne.s32.totalorder %s119, %s120
    %p132 = scmp.eq.s32.totalorder %s31, 1
    %p133 = por %p131, %p132
    %p135 = scmp.ne.s32.totalorder %s120, %s134
    %p136 = scmp.eq.s32.totalorder %s31, 0
    %p137 = por %p135, %p136
    %s139 = sadd.s32 %s138, 1
    %p142 = scmp.eq.s32.totalorder %s25, 1
    %p143 = scmp.ne.s32.totalorder %s138, %s140
    %p144 = scmp.eq.s32.totalorder %s25, 0
    %p145 = por %p143, %p144
    %p146 = scmp.ne.s32.totalorder %s138, %s140
    %p147 = scmp.eq.s32.totalorder %s30, 1
    %p148 = por %p146, %p147
    %p149 = scmp.ne.s32.totalorder %s140, %s141
    %p150 = scmp.eq.s32.totalorder %s30, 0
    %p151 = por %p149, %p150
    %p152 = scmp.ne.s32.totalorder %s140, %s141
    %p153 = scmp.eq.s32.totalorder %s31, 1
    %p154 = por %p152, %p153
    %p156 = scmp.ne.s32.totalorder %s141, %s155
    %p157 = scmp.eq.s32.totalorder %s31, 0
    %p158 = por %p156, %p157
    %s160 = sadd.s32 %s159, 1
    %p163 = scmp.eq.s32.totalorder %s25, 1
    %p164 = scmp.ne.s32.totalorder %s159, %s161
    %p165 = scmp.eq.s32.totalorder %s25, 0
    %p166 = por %p164, %p165
    %p167 = scmp.ne.s32.totalorder %s159, %s161
    %p168 = scmp.eq.s32.totalorder %s30, 1
    %p169 = por %p167, %p168
    %p170 = scmp.ne.s32.totalorder %s161, %s162
    %p171 = scmp.eq.s32.totalorder %s30, 0
    %p172 = por %p170, %p171
    %p173 = scmp.ne.s32.totalorder %s161, %s162
    %p174 = scmp.eq.s32.totalorder %s31, 1
    %p175 = por %p173, %p174
    %p177 = scmp.ne.s32.totalorder %s162, %s176
    %p178 = scmp.eq.s32.totalorder %s31, 0
    %p179 = por %p177, %p178
    %s180 = ssub.s32 %s25, %s32
    %p181 = scmp.eq.s32.totalorder %s180, 0
    %s183 = sadd.s32 %s182, 1
    %s184 = scalar_select %p181, %s182, %s183
    %p187 = pneg %p181
    %p188 = scmp.eq.s32.totalorder %s25, 1
    %p189 = por %p187, %p188
    %p190 = scmp.ne.s32.totalorder %s182, %s185
    %p191 = scmp.eq.s32.totalorder %s25, 0
    %p192 = por %p190, %p191
    %p193 = scmp.ne.s32.totalorder %s182, %s185
    %p194 = scmp.eq.s32.totalorder %s30, 1
    %p195 = por %p193, %p194
    %p196 = scmp.ne.s32.totalorder %s185, %s186
    %p197 = scmp.eq.s32.totalorder %s30, 0
    %p198 = por %p196, %p197
    %p199 = scmp.ne.s32.totalorder %s185, %s186
    %p200 = scmp.eq.s32.totalorder %s31, 1
    %p201 = por %p199, %p200
    %p203 = scmp.ne.s32.totalorder %s186, %s202
    %p204 = scmp.eq.s32.totalorder %s31, 0
    %p205 = por %p203, %p204
    %s206 = ssub.s32 %s25, %s32
    %p207 = scmp.eq.s32.totalorder %s206, 0
    %s209 = sadd.s32 %s208, 1
    %s210 = scalar_select %p207, %s208, %s209
    %p213 = pneg %p207
    %p214 = scmp.eq.s32.totalorder %s25, 1
    %p215 = por %p213, %p214
    %p216 = scmp.ne.s32.totalorder %s208, %s211
    %p217 = scmp.eq.s32.totalorder %s25, 0
    %p218 = por %p216, %p217
    %p219 = scmp.ne.s32.totalorder %s208, %s211
    %p220 = scmp.eq.s32.totalorder %s30, 1
    %p221 = por %p219, %p220
    %p222 = scmp.ne.s32.totalorder %s211, %s212
    %p223 = scmp.eq.s32.totalorder %s30, 0
    %p224 = por %p222, %p223
    %p225 = scmp.ne.s32.totalorder %s211, %s212
    %p226 = scmp.eq.s32.totalorder %s31, 1
    %p227 = por %p225, %p226
    %p229 = scmp.ne.s32.totalorder %s212, %s228
    %p230 = scmp.eq.s32.totalorder %s31, 0
    %p231 = por %p229, %p230
    %s232 = ssub.s32 %s25, %s32
    %p233 = scmp.eq.s32.totalorder %s232, 0
    %s235 = sadd.s32 %s234, 1
    %s236 = scalar_select %p233, %s234, %s235
    %p239 = pneg %p233
    %p240 = scmp.eq.s32.totalorder %s25, 1
    %p241 = por %p239, %p240
    %p242 = scmp.ne.s32.totalorder %s234, %s237
    %p243 = scmp.eq.s32.totalorder %s25, 0
    %p244 = por %p242, %p243
    %p245 = scmp.ne.s32.totalorder %s234, %s237
    %p246 = scmp.eq.s32.totalorder %s30, 1
    %p247 = por %p245, %p246
    %p248 = scmp.ne.s32.totalorder %s237, %s238
    %p249 = scmp.eq.s32.totalorder %s30, 0
    %p250 = por %p248, %p249
    %p251 = scmp.ne.s32.totalorder %s237, %s238
    %p252 = scmp.eq.s32.totalorder %s31, 1
    %p253 = por %p251, %p252
    %p255 = scmp.ne.s32.totalorder %s238, %s254
    %p256 = scmp.eq.s32.totalorder %s31, 0
    %p257 = por %p255, %p256
    %s258 = ssub.s32 %s25, %s32
    %p259 = scmp.eq.s32.totalorder %s258, 0
    %s261 = sadd.s32 %s260, 1
    %s262 = scalar_select %p259, %s260, %s261
    %p265 = pneg %p259
    %p266 = scmp.eq.s32.totalorder %s25, 1
    %p267 = por %p265, %p266
    %p268 = scmp.ne.s32.totalorder %s260, %s263
    %p269 = scmp.eq.s32.totalorder %s25, 0
    %p270 = por %p268, %p269
    %p271 = scmp.ne.s32.totalorder %s260, %s263
    %p272 = scmp.eq.s32.totalorder %s30, 1
    %p273 = por %p271, %p272
    %p274 = scmp.ne.s32.totalorder %s263, %s264
    %p275 = scmp.eq.s32.totalorder %s30, 0
    %p276 = por %p274, %p275
    %p277 = scmp.ne.s32.totalorder %s263, %s264
    %p278 = scmp.eq.s32.totalorder %s31, 1
    %p279 = por %p277, %p278
    %p281 = scmp.ne.s32.totalorder %s264, %s280
    %p282 = scmp.eq.s32.totalorder %s31, 0
    %p283 = por %p281, %p282
    %s284 = ssub.s32 %s25, %s32
    %p285 = scmp.eq.s32.totalorder %s284, 0
    %s287 = sadd.s32 %s286, 1
    %s288 = scalar_select %p285, %s286, %s287
    %p291 = pneg %p285
    %p292 = scmp.eq.s32.totalorder %s25, 1
    %p293 = por %p291, %p292
    %p294 = scmp.ne.s32.totalorder %s286, %s289
    %p295 = scmp.eq.s32.totalorder %s25, 0
    %p296 = por %p294, %p295
    %p297 = scmp.ne.s32.totalorder %s286, %s289
    %p298 = scmp.eq.s32.totalorder %s30, 1
    %p299 = por %p297, %p298
    %p300 = scmp.ne.s32.totalorder %s289, %s290
    %p301 = scmp.eq.s32.totalorder %s30, 0
    %p302 = por %p300, %p301
    %p303 = scmp.ne.s32.totalorder %s289, %s290
    %p304 = scmp.eq.s32.totalorder %s31, 1
    %p305 = por %p303, %p304
    %p307 = scmp.ne.s32.totalorder %s290, %s306
    %p308 = scmp.eq.s32.totalorder %s31, 0
    %p309 = por %p307, %p308
    %s310 = ssub.s32 %s25, %s32
    %p311 = scmp.eq.s32.totalorder %s310, 0
    %s313 = sadd.s32 %s312, 1
    %s314 = scalar_select %p311, %s312, %s313
    %p317 = pneg %p311
    %p318 = scmp.eq.s32.totalorder %s25, 1
    %p319 = por %p317, %p318
    %p320 = scmp.ne.s32.totalorder %s312, %s315
    %p321 = scmp.eq.s32.totalorder %s25, 0
    %p322 = por %p320, %p321
    %p323 = scmp.ne.s32.totalorder %s312, %s315
    %p324 = scmp.eq.s32.totalorder %s30, 1
    %p325 = por %p323, %p324
    %p326 = scmp.ne.s32.totalorder %s315, %s316
    %p327 = scmp.eq.s32.totalorder %s30, 0
    %p328 = por %p326, %p327
    %p329 = scmp.ne.s32.totalorder %s315, %s316
    %p330 = scmp.eq.s32.totalorder %s31, 1
    %p331 = por %p329, %p330
    %p333 = scmp.ne.s32.totalorder %s316, %s332
    %p334 = scmp.eq.s32.totalorder %s31, 0
    %p335 = por %p333, %p334
    %s336 = ssub.s32 %s25, %s32
    %p337 = scmp.eq.s32.totalorder %s336, 0
    %s339 = sadd.s32 %s338, 1
    %s340 = scalar_select %p337, %s338, %s339
    %p343 = pneg %p337
    %p344 = scmp.eq.s32.totalorder %s25, 1
    %p345 = por %p343, %p344
    %p346 = scmp.ne.s32.totalorder %s338, %s341
    %p347 = scmp.eq.s32.totalorder %s25, 0
    %p348 = por %p346, %p347
    %p349 = scmp.ne.s32.totalorder %s338, %s341
    %p350 = scmp.eq.s32.totalorder %s30, 1
    %p351 = por %p349, %p350
    %p352 = scmp.ne.s32.totalorder %s341, %s342
    %p353 = scmp.eq.s32.totalorder %s30, 0
    %p354 = por %p352, %p353
    %p355 = scmp.ne.s32.totalorder %s341, %s342
    %p356 = scmp.eq.s32.totalorder %s31, 1
    %p357 = por %p355, %p356
    %p359 = scmp.ne.s32.totalorder %s342, %s358
    %p360 = scmp.eq.s32.totalorder %s31, 0
    %p361 = por %p359, %p360
    %s362 = ssub.s32 %s25, %s32
    %p363 = scmp.eq.s32.totalorder %s362, 0
    %s365 = sadd.s32 %s364, 1
    %s366 = scalar_select %p363, %s364, %s365
    %p369 = pneg %p363
    %p370 = scmp.eq.s32.totalorder %s25, 1
    %p371 = por %p369, %p370
    %p372 = scmp.ne.s32.totalorder %s364, %s367
    %p373 = scmp.eq.s32.totalorder %s25, 0
    %p374 = por %p372, %p373
    %p375 = scmp.ne.s32.totalorder %s364, %s367
    %p376 = scmp.eq.s32.totalorder %s30, 1
    %p377 = por %p375, %p376
    %p378 = scmp.ne.s32.totalorder %s367, %s368
    %p379 = scmp.eq.s32.totalorder %s30, 0
    %p380 = por %p378, %p379
    %p381 = scmp.ne.s32.totalorder %s367, %s368
    %p382 = scmp.eq.s32.totalorder %s31, 1
    %p383 = por %p381, %p382
    %p385 = scmp.ne.s32.totalorder %s368, %s384
    %p386 = scmp.eq.s32.totalorder %s31, 0
    %p387 = por %p385, %p386
    %s388 = ssub.s32 %s25, %s32
    %p389 = scmp.eq.s32.totalorder %s388, 0
    %s391 = sadd.s32 %s390, 1
    %s392 = scalar_select %p389, %s390, %s391
    %p395 = pneg %p389
    %p396 = scmp.eq.s32.totalorder %s25, 1
    %p397 = por %p395, %p396
    %p398 = scmp.ne.s32.totalorder %s390, %s393
    %p399 = scmp.eq.s32.totalorder %s25, 0
    %p400 = por %p398, %p399
    %p401 = scmp.ne.s32.totalorder %s390, %s393
    %p402 = scmp.eq.s32.totalorder %s30, 1
    %p403 = por %p401, %p402
    %p404 = scmp.ne.s32.totalorder %s393, %s394
    %p405 = scmp.eq.s32.totalorder %s30, 0
    %p406 = por %p404, %p405
    %p407 = scmp.ne.s32.totalorder %s393, %s394
    %p408 = scmp.eq.s32.totalorder %s31, 1
    %p409 = por %p407, %p408
    %p411 = scmp.ne.s32.totalorder %s394, %s410
    %p412 = scmp.eq.s32.totalorder %s31, 0
    %p413 = por %p411, %p412
    %s414 = ssub.s32 %s25, %s32
    %p415 = scmp.eq.s32.totalorder %s414, 0
    %s417 = sadd.s32 %s416, 1
    %s418 = scalar_select %p415, %s416, %s417
    %p421 = pneg %p415
    %p422 = scmp.eq.s32.totalorder %s25, 1
    %p423 = por %p421, %p422
    %p424 = scmp.ne.s32.totalorder %s416, %s419
    %p425 = scmp.eq.s32.totalorder %s25, 0
    %p426 = por %p424, %p425
    %p427 = scmp.ne.s32.totalorder %s416, %s419
    %p428 = scmp.eq.s32.totalorder %s30, 1
    %p429 = por %p427, %p428
    %p430 = scmp.ne.s32.totalorder %s419, %s420
    %p431 = scmp.eq.s32.totalorder %s30, 0
    %p432 = por %p430, %p431
    %p433 = scmp.ne.s32.totalorder %s419, %s420
    %p434 = scmp.eq.s32.totalorder %s31, 1
    %p435 = por %p433, %p434
    %p437 = scmp.ne.s32.totalorder %s420, %s436
    %p438 = scmp.eq.s32.totalorder %s31, 0
    %p439 = por %p437, %p438
    %s440 = ssub.s32 %s25, %s32
    %p441 = scmp.eq.s32.totalorder %s440, 0
    %s443 = sadd.s32 %s442, 1
    %s444 = scalar_select %p441, %s442, %s443
    %p447 = pneg %p441
    %p448 = scmp.eq.s32.totalorder %s25, 1
    %p449 = por %p447, %p448
    %p450 = scmp.ne.s32.totalorder %s442, %s445
    %p451 = scmp.eq.s32.totalorder %s25, 0
    %p452 = por %p450, %p451
    %p453 = scmp.ne.s32.totalorder %s442, %s445
    %p454 = scmp.eq.s32.totalorder %s30, 1
    %p455 = por %p453, %p454
    %p456 = scmp.ne.s32.totalorder %s445, %s446
    %p457 = scmp.eq.s32.totalorder %s30, 0
    %p458 = por %p456, %p457
    %p459 = scmp.ne.s32.totalorder %s445, %s446
    %p460 = scmp.eq.s32.totalorder %s31, 1
    %p461 = por %p459, %p460
    %p463 = scmp.ne.s32.totalorder %s446, %s462
    %p464 = scmp.eq.s32.totalorder %s31, 0
    %p465 = por %p463, %p464
    %s466 = ssub.s32 %s25, %s32
    %p467 = scmp.eq.s32.totalorder %s466, 0
    %s469 = sadd.s32 %s468, 1
    %s470 = scalar_select %p467, %s468, %s469
    %p473 = pneg %p467
    %p474 = scmp.eq.s32.totalorder %s25, 1
    %p475 = por %p473, %p474
    %p476 = scmp.ne.s32.totalorder %s468, %s471
    %p477 = scmp.eq.s32.totalorder %s25, 0
    %p478 = por %p476, %p477
    %p479 = scmp.ne.s32.totalorder %s468, %s471
    %p480 = scmp.eq.s32.totalorder %s30, 1
    %p481 = por %p479, %p480
    %p482 = scmp.ne.s32.totalorder %s471, %s472
    %p483 = scmp.eq.s32.totalorder %s30, 0
    %p484 = por %p482, %p483
    %p485 = scmp.ne.s32.totalorder %s471, %s472
    %p486 = scmp.eq.s32.totalorder %s31, 1
    %p487 = por %p485, %p486
    %p489 = scmp.ne.s32.totalorder %s472, %s488
    %p490 = scmp.eq.s32.totalorder %s31, 0
    %p491 = por %p489, %p490
    %s493 = sadd.s32 %s492, 1
    %p496 = scmp.eq.s32.totalorder %s25, 1
    %p497 = scmp.ne.s32.totalorder %s492, %s494
    %p498 = scmp.eq.s32.totalorder %s25, 0
    %p499 = por %p497, %p498
    %p500 = scmp.ne.s32.totalorder %s492, %s494
    %p501 = scmp.eq.s32.totalorder %s30, 1
    %p502 = por %p500, %p501
    %p503 = scmp.ne.s32.totalorder %s494, %s495
    %p504 = scmp.eq.s32.totalorder %s30, 0
    %p505 = por %p503, %p504
    %p506 = scmp.ne.s32.totalorder %s494, %s495
    %p507 = scmp.eq.s32.totalorder %s31, 1
    %p508 = por %p506, %p507
    %p510 = scmp.ne.s32.totalorder %s495, %s509
    %p511 = scmp.eq.s32.totalorder %s31, 0
    %p512 = por %p510, %p511
    %p513 = scmp.le.s32.totalorder 1, %s25
    %p514 = scmp.lt.s32.totalorder %s25, 3
    %p515 = pnand %p513, %p514
    %p516 = pneg %p515
    // Predicated region
    $region9: #{image_classifier_finetuner_forward.1} parent=5 // pred_check
      _
    $region10: #{image_classifier_finetuner_forward.1} parent=5 // pred_check_branch
      %518 = sbr.rel (%p515) target = $region12
    $region11: #{image_classifier_finetuner_forward.1} parent=5 // pred_region
      %s519 = ssub.s32 %s25, 1
      // Predicated region
      $region13: #{image_classifier_finetuner_forward.1} parent=11 // pred_check
        %p520 = pneg %p46
      $region14: #{image_classifier_finetuner_forward.1} parent=11 // pred_check_branch
        %522 = sbr.rel (%p520) target = $region16
      $region15: #{image_classifier_finetuner_forward.1} parent=11 // pred_region
        _
      $region16: #{image_classifier_finetuner_forward.1} parent=11 // pred_fallthru
        _
      // Predicated region
      $region17: #{image_classifier_finetuner_forward.1} parent=11 // pred_check
        %p523 = pneg %p67
      $region18: #{image_classifier_finetuner_forward.1} parent=11 // pred_check_branch
        %525 = sbr.rel (%p523) target = $region20
      $region19: #{image_classifier_finetuner_forward.1} parent=11 // pred_region
        _
      $region20: #{image_classifier_finetuner_forward.1} parent=11 // pred_fallthru
        _
      // Predicated region
      $region21: #{image_classifier_finetuner_forward.1} parent=11 // pred_check
        %p526 = pneg %p88
      $region22: #{image_classifier_finetuner_forward.1} parent=11 // pred_check_branch
        %528 = sbr.rel (%p526) target = $region24
      $region23: #{image_classifier_finetuner_forward.1} parent=11 // pred_region
        _
      $region24: #{image_classifier_finetuner_forward.1} parent=11 // pred_fallthru
        _
      // Predicated region
      $region25: #{image_classifier_finetuner_forward.1} parent=11 // pred_check
        %p529 = pneg %p109
      $region26: #{image_classifier_finetuner_forward.1} parent=11 // pred_check_branch
        %531 = sbr.rel (%p529) target = $region28
      $region27: #{image_classifier_finetuner_forward.1} parent=11 // pred_region
        _
      $region28: #{image_classifier_finetuner_forward.1} parent=11 // pred_fallthru
        _
      // Predicated region
      $region29: #{image_classifier_finetuner_forward.1} parent=11 // pred_check
        %p532 = pneg %p130
      $region30: #{image_classifier_finetuner_forward.1} parent=11 // pred_check_branch
        %534 = sbr.rel (%p532) target = $region32
      $region31: #{image_classifier_finetuner_forward.1} parent=11 // pred_region
        _
      $region32: #{image_classifier_finetuner_forward.1} parent=11 // pred_fallthru
        _
      // Predicated region
      $region33: #{image_classifier_finetuner_forward.1} parent=11 // pred_check
        %p535 = pneg %p151
      $region34: #{image_classifier_finetuner_forward.1} parent=11 // pred_check_branch
        %537 = sbr.rel (%p535) target = $region36
      $region35: #{image_classifier_finetuner_forward.1} parent=11 // pred_region
        _
      $region36: #{image_classifier_finetuner_forward.1} parent=11 // pred_fallthru
        _
      // Predicated region
      $region37: #{image_classifier_finetuner_forward.1} parent=11 // pred_check
        %p538 = pneg %p172
      $region38: #{image_classifier_finetuner_forward.1} parent=11 // pred_check_branch
        %540 = sbr.rel (%p538) target = $region40
      $region39: #{image_classifier_finetuner_forward.1} parent=11 // pred_region
        _
      $region40: #{image_classifier_finetuner_forward.1} parent=11 // pred_fallthru
        _
    $region12: #{image_classifier_finetuner_forward.1} parent=5 // pred_fallthru
      _
    %p541 = scmp.lt.s32.totalorder %s25, 2
    // Predicated region
    $region41: #{image_classifier_finetuner_forward.1} parent=5 // pred_check
      %p542 = pneg %p541
    $region42: #{image_classifier_finetuner_forward.1} parent=5 // pred_check_branch
      %544 = sbr.rel (%p542) target = $region44
    $region43: #{image_classifier_finetuner_forward.1} parent=5 // pred_region
      // Predicated region
      $region45: #{image_classifier_finetuner_forward.1} parent=43 // pred_check
        %p545 = pneg %p192
      $region46: #{image_classifier_finetuner_forward.1} parent=43 // pred_check_branch
        %547 = sbr.rel (%p545) target = $region48
      $region47: #{image_classifier_finetuner_forward.1} parent=43 // pred_region
        %p548 = scmp.lt.s32.totalorder %s25, 1
        %s549 = scalar_select %p548, %s25, 1
        %s550 = scalar_lea.vmem %s7, %s549
      $region48: #{image_classifier_finetuner_forward.1} parent=43 // pred_fallthru
        _
      // Predicated region
      $region49: #{image_classifier_finetuner_forward.1} parent=43 // pred_check
        %p551 = pneg %p218
      $region50: #{image_classifier_finetuner_forward.1} parent=43 // pred_check_branch
        %553 = sbr.rel (%p551) target = $region52
      $region51: #{image_classifier_finetuner_forward.1} parent=43 // pred_region
        %p554 = scmp.lt.s32.totalorder %s25, 1
        %s555 = scalar_select %p554, %s25, 1
        %s556 = scalar_lea.vmem %s8, %s555
      $region52: #{image_classifier_finetuner_forward.1} parent=43 // pred_fallthru
        _
      // Predicated region
      $region53: #{image_classifier_finetuner_forward.1} parent=43 // pred_check
        %p557 = pneg %p244
      $region54: #{image_classifier_finetuner_forward.1} parent=43 // pred_check_branch
        %559 = sbr.rel (%p557) target = $region56
      $region55: #{image_classifier_finetuner_forward.1} parent=43 // pred_region
        %p560 = scmp.lt.s32.totalorder %s25, 1
        %s561 = scalar_select %p560, %s25, 1
        %s562 = smul.addr %s561, 4
        %s563 = smul.addr %s562, 4
        %s564 = scalar_lea.vmem %s9, %s563
      $region56: #{image_classifier_finetuner_forward.1} parent=43 // pred_fallthru
        _
      // Predicated region
      $region57: #{image_classifier_finetuner_forward.1} parent=43 // pred_check
        %p565 = pneg %p270
      $region58: #{image_classifier_finetuner_forward.1} parent=43 // pred_check_branch
        %567 = sbr.rel (%p565) target = $region60
      $region59: #{image_classifier_finetuner_forward.1} parent=43 // pred_region
        %p568 = scmp.lt.s32.totalorder %s25, 1
        %s569 = scalar_select %p568, %s25, 1
        %s570 = scalar_lea.vmem %s10, %s569
      $region60: #{image_classifier_finetuner_forward.1} parent=43 // pred_fallthru
        _
      // Predicated region
      $region61: #{image_classifier_finetuner_forward.1} parent=43 // pred_check
        %p571 = pneg %p296
      $region62: #{image_classifier_finetuner_forward.1} parent=43 // pred_check_branch
        %573 = sbr.rel (%p571) target = $region64
      $region63: #{image_classifier_finetuner_forward.1} parent=43 // pred_region
        %p574 = scmp.lt.s32.totalorder %s25, 1
        %s575 = scalar_select %p574, %s25, 1
        %s576 = smul.addr %s575, 4
        %s577 = smul.addr %s576, 4
        %s578 = scalar_lea.vmem %s11, %s577
      $region64: #{image_classifier_finetuner_forward.1} parent=43 // pred_fallthru
        _
      // Predicated region
      $region65: #{image_classifier_finetuner_forward.1} parent=43 // pred_check
        %p579 = pneg %p322
      $region66: #{image_classifier_finetuner_forward.1} parent=43 // pred_check_branch
        %581 = sbr.rel (%p579) target = $region68
      $region67: #{image_classifier_finetuner_forward.1} parent=43 // pred_region
        %p582 = scmp.lt.s32.totalorder %s25, 1
        %s583 = scalar_select %p582, %s25, 1
        %s584 = scalar_lea.vmem %s12, %s583
      $region68: #{image_classifier_finetuner_forward.1} parent=43 // pred_fallthru
        _
      // Predicated region
      $region69: #{image_classifier_finetuner_forward.1} parent=43 // pred_check
        %p585 = pneg %p348
      $region70: #{image_classifier_finetuner_forward.1} parent=43 // pred_check_branch
        %587 = sbr.rel (%p585) target = $region72
      $region71: #{image_classifier_finetuner_forward.1} parent=43 // pred_region
        %p588 = scmp.lt.s32.totalorder %s25, 1
        %s589 = scalar_select %p588, %s25, 1
        %s590 = scalar_lea.vmem %s13, %s589
      $region72: #{image_classifier_finetuner_forward.1} parent=43 // pred_fallthru
        _
      // Predicated region
      $region73: #{image_classifier_finetuner_forward.1} parent=43 // pred_check
        %p591 = pneg %p374
      $region74: #{image_classifier_finetuner_forward.1} parent=43 // pred_check_branch
        %593 = sbr.rel (%p591) target = $region76
      $region75: #{image_classifier_finetuner_forward.1} parent=43 // pred_region
        %p594 = scmp.lt.s32.totalorder %s25, 1
        %s595 = scalar_select %p594, %s25, 1
        %s596 = scalar_lea.vmem %s14, %s595
      $region76: #{image_classifier_finetuner_forward.1} parent=43 // pred_fallthru
        _
      // Predicated region
      $region77: #{image_classifier_finetuner_forward.1} parent=43 // pred_check
        %p597 = pneg %p400
      $region78: #{image_classifier_finetuner_forward.1} parent=43 // pred_check_branch
        %599 = sbr.rel (%p597) target = $region80
      $region79: #{image_classifier_finetuner_forward.1} parent=43 // pred_region
        %p600 = scmp.lt.s32.totalorder %s25, 1
        %s601 = scalar_select %p600, %s25, 1
        %s602 = smul.addr %s601, 4
        %s603 = smul.addr %s602, 4
        %s604 = scalar_lea.vmem %s15, %s603
      $region80: #{image_classifier_finetuner_forward.1} parent=43 // pred_fallthru
        _
      // Predicated region
      $region81: #{image_classifier_finetuner_forward.1} parent=43 // pred_check
        %p605 = pneg %p426
      $region82: #{image_classifier_finetuner_forward.1} parent=43 // pred_check_branch
        %607 = sbr.rel (%p605) target = $region84
      $region83: #{image_classifier_finetuner_forward.1} parent=43 // pred_region
        %p608 = scmp.lt.s32.totalorder %s25, 1
        %s609 = scalar_select %p608, %s25, 1
        %s610 = scalar_lea.vmem %s16, %s609
      $region84: #{image_classifier_finetuner_forward.1} parent=43 // pred_fallthru
        _
      // Predicated region
      $region85: #{image_classifier_finetuner_forward.1} parent=43 // pred_check
        %p611 = pneg %p452
      $region86: #{image_classifier_finetuner_forward.1} parent=43 // pred_check_branch
        %613 = sbr.rel (%p611) target = $region88
      $region87: #{image_classifier_finetuner_forward.1} parent=43 // pred_region
        %p614 = scmp.lt.s32.totalorder %s25, 1
        %s615 = scalar_select %p614, %s25, 1
        %s616 = smul.addr %s615, 16
        %s617 = smul.addr %s616, 4
        %s618 = scalar_lea.vmem %s17, %s617
      $region88: #{image_classifier_finetuner_forward.1} parent=43 // pred_fallthru
        _
      // Predicated region
      $region89: #{image_classifier_finetuner_forward.1} parent=43 // pred_check
        %p619 = pneg %p478
      $region90: #{image_classifier_finetuner_forward.1} parent=43 // pred_check_branch
        %621 = sbr.rel (%p619) target = $region92
      $region91: #{image_classifier_finetuner_forward.1} parent=43 // pred_region
        %p622 = scmp.lt.s32.totalorder %s25, 1
        %s623 = scalar_select %p622, %s25, 1
        %s624 = scalar_lea.vmem %s18, %s623
      $region92: #{image_classifier_finetuner_forward.1} parent=43 // pred_fallthru
        _
    $region44: #{image_classifier_finetuner_forward.1} parent=5 // pred_fallthru
      _
    %p625 = scmp.le.s32.totalorder 1, %s25
    %p626 = scmp.lt.s32.totalorder %s25, 3
    %p627 = pnand %p625, %p626
    %p628 = pneg %p627
    // Predicated region
    $region93: #{image_classifier_finetuner_forward.1} parent=5 // pred_check
      _
    $region94: #{image_classifier_finetuner_forward.1} parent=5 // pred_check_branch
      %630 = sbr.rel (%p627) target = $region96
    $region95: #{image_classifier_finetuner_forward.1} parent=5 // pred_region
      %s631 = ssub.s32 %s25, 1
      %p632 = pneg %p46
      %p633 = pneg %p43
      %p634 = pneg %p67
      %p635 = pneg %p64
      %p636 = pneg %p88
      %p637 = pneg %p85
      %p638 = pneg %p109
      %p639 = pneg %p106
      %p640 = pneg %p130
      %p641 = pneg %p127
      %p642 = pneg %p151
      %p643 = pneg %p148
      %p644 = pneg %p172
      %p645 = pneg %p169
      %p646 = scmp.lt.s32.totalorder %s30, 1
      %s647 = scalar_select %p646, %s30, 1
      %s648 = scalar_lea.vmem %s7, %s647
      %p649 = pneg %p198
      %p650 = pneg %p195
      %p651 = scmp.lt.s32.totalorder %s30, 1
      %s652 = scalar_select %p651, %s30, 1
      %s653 = scalar_lea.vmem %s8, %s652
      %p654 = pneg %p224
      %p655 = pneg %p221
      %p656 = scmp.lt.s32.totalorder %s30, 1
      %s657 = scalar_select %p656, %s30, 1
      %s658 = smul.addr %s657, 4
      %s659 = smul.addr %s658, 4
      %s660 = scalar_lea.vmem %s9, %s659
      %p661 = pneg %p250
      %p662 = pneg %p247
      %p663 = scmp.lt.s32.totalorder %s30, 1
      %s664 = scalar_select %p663, %s30, 1
      %s665 = scalar_lea.vmem %s10, %s664
      %p666 = pneg %p276
      %p667 = pneg %p273
      %p668 = scmp.lt.s32.totalorder %s30, 1
      %s669 = scalar_select %p668, %s30, 1
      %s670 = smul.addr %s669, 4
      %s671 = smul.addr %s670, 4
      %s672 = scalar_lea.vmem %s11, %s671
      %p673 = pneg %p302
      %p674 = pneg %p299
      %p675 = scmp.lt.s32.totalorder %s30, 1
      %s676 = scalar_select %p675, %s30, 1
      %s677 = scalar_lea.vmem %s12, %s676
      %p678 = pneg %p328
      %p679 = pneg %p325
      %p680 = scmp.lt.s32.totalorder %s30, 1
      %s681 = scalar_select %p680, %s30, 1
      %s682 = scalar_lea.vmem %s13, %s681
      %p683 = pneg %p354
      %p684 = pneg %p351
      %p685 = scmp.lt.s32.totalorder %s30, 1
      %s686 = scalar_select %p685, %s30, 1
      %s687 = scalar_lea.vmem %s14, %s686
      %p688 = pneg %p380
      %p689 = pneg %p377
      %p690 = scmp.lt.s32.totalorder %s30, 1
      %s691 = scalar_select %p690, %s30, 1
      %s692 = smul.addr %s691, 4
      %s693 = smul.addr %s692, 4
      %s694 = scalar_lea.vmem %s15, %s693
      %p695 = pneg %p406
      %p696 = pneg %p403
      %p697 = scmp.lt.s32.totalorder %s30, 1
      %s698 = scalar_select %p697, %s30, 1
      %s699 = scalar_lea.vmem %s16, %s698
      %p700 = pneg %p432
      %p701 = pneg %p429
      %p702 = scmp.lt.s32.totalorder %s30, 1
      %s703 = scalar_select %p702, %s30, 1
      %s704 = smul.addr %s703, 16
      %s705 = smul.addr %s704, 4
      %s706 = scalar_lea.vmem %s17, %s705
      %p707 = pneg %p458
      %p708 = pneg %p455
      %p709 = scmp.lt.s32.totalorder %s30, 1
      %s710 = scalar_select %p709, %s30, 1
      %s711 = scalar_lea.vmem %s18, %s710
      %p712 = pneg %p484
      %p713 = pneg %p481
      %p714 = pneg %p505
      %p715 = pneg %p502
      %p716 = scmp.lt.s32.totalorder %s30, 1
      %s717 = scalar_select %p716, %s30, 1
      %s718 = scalar_lea.vmem %s7, %s717
      %p719 = scmp.lt.s32.totalorder %s30, 1
      %s720 = scalar_select %p719, %s30, 1
      %s721 = scalar_lea.vmem %s8, %s720
      %p722 = scmp.lt.s32.totalorder %s30, 1
      %s723 = scalar_select %p722, %s30, 1
      %s724 = smul.addr %s723, 4
      %s725 = smul.addr %s724, 4
      %s726 = scalar_lea.vmem %s9, %s725
      %p727 = scmp.lt.s32.totalorder %s30, 1
      %s728 = scalar_select %p727, %s30, 1
      %s729 = scalar_lea.vmem %s10, %s728
      %p730 = scmp.lt.s32.totalorder %s30, 1
      %s731 = scalar_select %p730, %s30, 1
      %s732 = smul.addr %s731, 4
      %s733 = smul.addr %s732, 4
      %s734 = scalar_lea.vmem %s11, %s733
      %p735 = scmp.lt.s32.totalorder %s30, 1
      %s736 = scalar_select %p735, %s30, 1
      %s737 = scalar_lea.vmem %s12, %s736
      %p738 = scmp.lt.s32.totalorder %s30, 1
      %s739 = scalar_select %p738, %s30, 1
      %s740 = scalar_lea.vmem %s13, %s739
      %p741 = scmp.lt.s32.totalorder %s30, 1
      %s742 = scalar_select %p741, %s30, 1
      %s743 = scalar_lea.vmem %s14, %s742
      %p744 = scmp.lt.s32.totalorder %s30, 1
      %s745 = scalar_select %p744, %s30, 1
      %s746 = smul.addr %s745, 4
      %s747 = smul.addr %s746, 4
      %s748 = scalar_lea.vmem %s15, %s747
      %p749 = scmp.lt.s32.totalorder %s30, 1
      %s750 = scalar_select %p749, %s30, 1
      %s751 = scalar_lea.vmem %s16, %s750
      %p752 = scmp.lt.s32.totalorder %s30, 1
      %s753 = scalar_select %p752, %s30, 1
      %s754 = smul.addr %s753, 16
      %s755 = smul.addr %s754, 4
      %s756 = scalar_lea.vmem %s17, %s755
      %p757 = scmp.lt.s32.totalorder %s30, 1
      %s758 = scalar_select %p757, %s30, 1
      %s759 = scalar_lea.vmem %s18, %s758
      %p761 = scmp.eq.s32.totalorder %s30, 0
      // Predicated region
      $region97: #{image_classifier_finetuner_forward.1} parent=95 // pred_check
        %p762 = pneg %p761
      $region98: #{image_classifier_finetuner_forward.1} parent=95 // pred_check_branch
        %764 = sbr.rel (%p762) target = $region100
      $region99: #{image_classifier_finetuner_forward.1} parent=95 // pred_region
        %v765 = vld [vmem:[%s0] sm:$0xff]
        %v766 = vld [vmem:[%s0 + $0x8] sm:$0xff]
        %v767 = vld [vmem:[%s1] sm:$0xf]
        %v768 = vld [vmem:[%s1 + $0x4] sm:$0xf]
        %v769 = vld [vmem:[%s1 + $0x8] sm:$0xf]
        %v770 = vld [vmem:[%s1 + $0xc] sm:$0xf]
        %v771 = vld [vmem:[%s1 + $0x10] sm:$0xf]
        %v772 = vld [vmem:[%s1 + $0x14] sm:$0xf]
        %v773 = vld [vmem:[%s1 + $0x18] sm:$0xf]
        %v774 = vld [vmem:[%s1 + $0x1c] sm:$0xf]
        %v775 = vld [vmem:[%s1 + $0x20] sm:$0xf]
        %v776 = vld [vmem:[%s1 + $0x24] sm:$0xf]
        %v777 = vld [vmem:[%s1 + $0x28] sm:$0xf]
        %v778 = vld [vmem:[%s1 + $0x2c] sm:$0xf]
        %v779 = vld [vmem:[%s1 + $0x30] sm:$0xf]
        %v780 = vld [vmem:[%s1 + $0x34] sm:$0xf]
        %v781 = vld [vmem:[%s1 + $0x38] sm:$0xf]
        %v782 = vld [vmem:[%s1 + $0x3c] sm:$0xf]
        %v783 = vld [vmem:[%s1 + $0x40] sm:$0xf]
        %v784 = vld [vmem:[%s1 + $0x44] sm:$0xf]
        %v785 = vld [vmem:[%s1 + $0x48] sm:$0xf]
        %v786 = vld [vmem:[%s1 + $0x4c] sm:$0xf]
        %v787 = vld [vmem:[%s1 + $0x50] sm:$0xf]
        %v788 = vld [vmem:[%s1 + $0x54] sm:$0xf]
        %v789 = vld [vmem:[%s1 + $0x58] sm:$0xf]
        %v790 = vld [vmem:[%s1 + $0x5c] sm:$0xf]
        %v791 = vld [vmem:[%s2] sm:$0xff]
        %v792 = vld [vmem:[%s2 + $0x8] sm:$0xff]
        %v795 = vunpack.c.l.b16 %v765
        %v796 = vunpack.c.h.b16 %v765
        %v797 = vunpack.c.l.b16 %v766
        %v798 = vunpack.c.h.b16 %v766
        %v799 = vpack.c.b16 %v797, %v795
        %v800 = vpack.c.b16 %v798, %v796
        %v826 = vunpack.c.l.b16 %v767
        %v827 = vunpack.c.l.b16 %v768
        %v828 = vunpack.c.l.b16 %v769
        %v829 = vunpack.c.l.b16 %v770
        %v830 = vunpack.c.l.b16 %v771
        %v831 = vunpack.c.l.b16 %v772
        %v832 = vunpack.c.l.b16 %v773
        %v833 = vunpack.c.l.b16 %v774
        %v834 = vunpack.c.l.b16 %v775
        %v835 = vunpack.c.l.b16 %v776
        %v836 = vunpack.c.l.b16 %v777
        %v837 = vunpack.c.l.b16 %v778
        %v838 = vunpack.c.l.b16 %v779
        %v839 = vunpack.c.l.b16 %v780
        %v840 = vunpack.c.l.b16 %v781
        %v841 = vunpack.c.l.b16 %v782
        %v842 = vunpack.c.l.b16 %v783
        %v843 = vunpack.c.l.b16 %v784
        %v844 = vunpack.c.l.b16 %v785
        %v845 = vunpack.c.l.b16 %v786
        %v846 = vunpack.c.l.b16 %v787
        %v847 = vunpack.c.l.b16 %v788
        %v848 = vunpack.c.l.b16 %v789
        %v849 = vunpack.c.l.b16 %v790
        %v850 = vpack.c.b16 %v827, %v826
        %v851 = vpack.c.b16 %v829, %v828
        %v852 = vpack.c.b16 %v831, %v830
        %v853 = vpack.c.b16 %v833, %v832
        %v854 = vpack.c.b16 %v835, %v834
        %v855 = vpack.c.b16 %v837, %v836
        %v856 = vpack.c.b16 %v839, %v838
        %v857 = vpack.c.b16 %v841, %v840
        %v858 = vpack.c.b16 %v843, %v842
        %v859 = vpack.c.b16 %v845, %v844
        %v860 = vpack.c.b16 %v847, %v846
        %v861 = vpack.c.b16 %v849, %v848
        %vm874 = vcmask 523264
        %v876 = vsel %vm874, %v800, 0
        %878 = vmatprep.subr.bf16.mxu0 0
        %879 = vmatpush1.bf16.msra.mxu0 %v850
        %880 = vmatprep.subr.bf16.mxu0 0
        %881 = vmatpush1.bf16.msra.mxu0 %v851
        %882 = vmatprep.subr.bf16.mxu0 0
        %883 = vmatpush1.bf16.msra.mxu0 %v852
        %884 = vmatprep.subr.bf16.mxu0 0
        %885 = vmatpush1.bf16.msra.mxu0 %v853
        %886 = vmatprep.subr.bf16.mxu0 0
        %887 = vmatpush1.bf16.msra.mxu0 %v854
        %888 = vmatprep.subr.bf16.mxu0 0
        %889 = vmatpush1.bf16.msra.mxu0 %v855
        %890 = vmatprep.subr.bf16.mxu0 0
        %891 = vmatpush1.bf16.msra.mxu0 %v856
        %892 = vmatprep.subr.bf16.mxu0 0
        %893 = vmatpush1.bf16.msra.mxu0 %v857
        %894 = vmatprep.subr.bf16.mxu0 0
        %895 = vmatpush1.bf16.msra.mxu0 %v858
        %896 = vmatprep.subr.bf16.mxu0 0
        %897 = vmatpush1.bf16.msra.mxu0 %v859
        %898 = vmatprep.subr.bf16.mxu0 0
        %899 = vmatpush1.bf16.msra.mxu0 %v860
        %900 = vmatprep.subr.bf16.mxu0 0
        %901 = vmatpush1.bf16.msra.mxu0 %v861
        %902 = vmatprep.subr.bf16.mxu0 0
        %903 = vmatpush1.bf16.msra.mxu0 0
        %904 = vmatprep.subr.bf16.mxu0 0
        %905 = vmatpush1.bf16.msra.mxu0 0
        %906 = vmatprep.subr.bf16.mxu0 0
        %907 = vmatpush1.bf16.msra.mxu0 0
        %908 = vmatprep.subr.bf16.mxu0 0
        %909 = vmatpush1.bf16.msra.mxu0 0
        %910 = vmatprep.mubr.bf16.mxu0 %v876
        %911 = vmatmul.mubr.bf16.gmra.mrb[0].mxu0 %v799
        %v912 = vpop.f32.mrb[0].mxu0
        %v913 = vadd.f32 %v791, %v912
        %v914 = vpop.f32.mrb[0].mxu0
        %v915 = vpop.f32.mrb[0].mxu0
        %v916 = vadd.f32 %v792, %v915
        %v917 = vpop.f32.mrb[0].mxu0
        %918 = vdwg.mxu0
        %vm919 = vcmask 261120
        %920 = vst.msk [vmem:[#allocation2] sm:$0xff] %vm919, %v913
        %921 = vst.msk [vmem:[#allocation2 + $0x8] sm:$0xff] %vm919, %v916
      $region100: #{image_classifier_finetuner_forward.1} parent=95 // pred_fallthru
        _
      %v922 = vld [vmem:[#allocation2] sm:$0xff]
      %v923 = vld [vmem:[#allocation2 + $0x8] sm:$0xff]
      %vm924 = vcmask 261120
      %v925 = vsel %vm924, %v922, 0.0
      %926 = vadd.xlane.f32.xlu0 %v925
      %v927 = vpop.xlane.xlu0 %926
      %v928 = vsel %vm924, %v923, 0.0
      %929 = vadd.xlane.f32.xlu0 %v928
      %v930 = vpop.xlane.xlu0 %929
      %v931 = vrcp.pop 32.0
      %v932 = vmul.f32 %v927, %v931
      %v933 = vmul.f32 %v930, %v931
      %v934 = vsub.f32 %v922, %v932
      %v935 = vsub.f32 %v923, %v933
      %v936 = vmul.f32 %v934, %v934
      %v937 = vmul.f32 %v935, %v935
      %v938 = vsel %vm924, %v936, 0.0
      %939 = vadd.xlane.f32.xlu0 %v938
      %v940 = vpop.xlane.xlu0 %939
      %v941 = vsel %vm924, %v937, 0.0
      %942 = vadd.xlane.f32.xlu0 %v941
      %v943 = vpop.xlane.xlu0 %942
      %v944 = vmul.f32 %v940, %v931
      %v945 = vmul.f32 %v943, %v931
      %v946 = vadd.f32 %v944, 1e-12
      %v947 = vadd.f32 %v945, 1e-12
      %v948 = vrsqrt.pop %v946
      %v949 = vrsqrt.pop %v947
      %v950 = vmul.f32 %v934, %v948
      %v951 = vmul.f32 %v935, %v949
      %v952 = vld [vmem:[%s718] sm:$0x1]
      %v954 = vlaneseq
      %v955 = vshrl.u32 %v954, 7
      %v956 = vsub.s32 0, %v955
      %v957 = vrot.slane %v952, %v956
      %v959 = vmul.f32 %v950, %v957
      %v960 = vmul.f32 %v951, %v957
      %v961 = vld [vmem:[%s721] sm:$0x1]
      %v963 = vlaneseq
      %v964 = vshrl.u32 %v963, 7
      %v965 = vsub.s32 0, %v964
      %v966 = vrot.slane %v961, %v965
      %v968 = vadd.f32 %v959, %v966
      %v969 = vadd.f32 %v960, %v966
      %v970 = vpack.c.bf16 %v969, %v968
      %v971 = vld [vmem:[%s726] sm:$0xf]
      %v972 = vld [vmem:[%s726 + $0x4] sm:$0xf]
      %v973 = vld [vmem:[%s726 + $0x8] sm:$0xf]
      %v974 = vld [vmem:[%s726 + $0xc] sm:$0xf]
      %v975 = vld [vmem:[%s729] sm:$0x1]
      %v977 = vlaneseq
      %v978 = vshrl.u32 %v977, 7
      %v979 = vsub.s32 0, %v978
      %v980 = vrot.slane %v975, %v979
      %v986 = vunpack.c.l.b16 %v971
      %v987 = vunpack.c.l.b16 %v972
      %v988 = vunpack.c.l.b16 %v973
      %v989 = vunpack.c.l.b16 %v974
      %v990 = vpack.c.b16 %v987, %v986
      %v991 = vpack.c.b16 %v989, %v988
      %v995 = vsel %vm924, %v970, 0
      %997 = vmatprep.subr.bf16.mxu0 0
      %998 = vmatpush1.bf16.msra.mxu0 %v990
      %999 = vmatprep.subr.bf16.mxu0 0
      %1000 = vmatpush1.bf16.msra.mxu0 %v991
      %1001 = vmatprep.subr.bf16.mxu0 0
      %1002 = vmatpush1.bf16.msra.mxu0 0
      %1003 = vmatprep.subr.bf16.mxu0 0
      %1004 = vmatpush1.bf16.msra.mxu0 0
      %1005 = vmatprep.subr.bf16.mxu0 0
      %1006 = vmatpush1.bf16.msra.mxu0 0
      %1007 = vmatprep.subr.bf16.mxu0 0
      %1008 = vmatpush1.bf16.msra.mxu0 0
      %1009 = vmatprep.subr.bf16.mxu0 0
      %1010 = vmatpush1.bf16.msra.mxu0 0
      %1011 = vmatprep.subr.bf16.mxu0 0
      %1012 = vmatpush1.bf16.msra.mxu0 0
      %1013 = vmatprep.subr.bf16.mxu0 0
      %1014 = vmatpush1.bf16.msra.mxu0 0
      %1015 = vmatprep.subr.bf16.mxu0 0
      %1016 = vmatpush1.bf16.msra.mxu0 0
      %1017 = vmatprep.subr.bf16.mxu0 0
      %1018 = vmatpush1.bf16.msra.mxu0 0
      %1019 = vmatprep.subr.bf16.mxu0 0
      %1020 = vmatpush1.bf16.msra.mxu0 0
      %1021 = vmatprep.subr.bf16.mxu0 0
      %1022 = vmatpush1.bf16.msra.mxu0 0
      %1023 = vmatprep.subr.bf16.mxu0 0
      %1024 = vmatpush1.bf16.msra.mxu0 0
      %1025 = vmatprep.subr.bf16.mxu0 0
      %1026 = vmatpush1.bf16.msra.mxu0 0
      %1027 = vmatprep.subr.bf16.mxu0 0
      %1028 = vmatpush1.bf16.msra.mxu0 0
      %1029 = vmatprep.mubr.bf16.mxu0 0
      %1030 = vmatmul.mubr.bf16.gmra.mrb[0].mxu0 %v995
      %v1031 = vpop.f32.mrb[0].mxu0
      %v1032 = vadd.f32 %v980, %v1031
      %v1033 = vpop.f32.mrb[0].mxu0
      %v1034 = vpop.f32.mrb[0].mxu0
      %v1035 = vadd.f32 %v980, %v1034
      %v1036 = vpop.f32.mrb[0].mxu0
      %1037 = vdwg.mxu0
      %v1038 = vlaneseq
      %v1039 = vand.u32 %v1038, 127
      %vm1040 = vcmp.lt.s32.totalorder %v1039, 5
      %v1041 = vsel %vm1040, 0.0, -1e+30
      %v1042 = vmul.f32 %v1032, 0.35355338
      %v1043 = vmul.f32 %v1035, 0.35355338
      %v1044 = vpack.c.bf16 %v1042, %v1042
      %v1045 = vpack.c.bf16 %v1043, %v1043
      %v1046 = vpack.c.bf16 %v1032, %v1032
      %v1047 = vpack.c.bf16 %v1035, %v1035
      %1049 = vrot.lane.b32.xlu0 %v1046, 96
      %v1050 = vpop.permute.xlu0 %1049
      %vm1051 = vcmask 64512
      %v1053 = vsel %vm1051, %v1044, 0
      %v1056 = vsel %vm1051, %v1050, 0
      %1058 = vmatprep.subr.bf16.mxu0 0
      %1059 = vmatpush1.bf16.xpose.msra.mxu0 %v1056
      %1060 = vmatprep.subr.bf16.mxu0 0
      %1061 = vmatpush1.bf16.xpose.msra.mxu0 0
      %1062 = vmatprep.subr.bf16.mxu0 0
      %1063 = vmatpush1.bf16.xpose.msra.mxu0 0
      %1064 = vmatprep.subr.bf16.mxu0 0
      %1065 = vmatpush1.bf16.xpose.msra.mxu0 0
      %1066 = vmatprep.subr.bf16.mxu0 0
      %1067 = vmatpush1.bf16.xpose.msra.mxu0 0
      %1068 = vmatprep.subr.bf16.mxu0 0
      %1069 = vmatpush1.bf16.xpose.msra.mxu0 0
      %1070 = vmatprep.subr.bf16.mxu0 0
      %1071 = vmatpush1.bf16.xpose.msra.mxu0 0
      %1072 = vmatprep.subr.bf16.mxu0 0
      %1073 = vmatpush1.bf16.xpose.msra.mxu0 0
      %1074 = vmatprep.subr.bf16.mxu0 0
      %1075 = vmatpush1.bf16.xpose.msra.mxu0 0
      %1076 = vmatprep.subr.bf16.mxu0 0
      %1077 = vmatpush1.bf16.xpose.msra.mxu0 0
      %1078 = vmatprep.subr.bf16.mxu0 0
      %1079 = vmatpush1.bf16.xpose.msra.mxu0 0
      %1080 = vmatprep.subr.bf16.mxu0 0
      %1081 = vmatpush1.bf16.xpose.msra.mxu0 0
      %1082 = vmatprep.subr.bf16.mxu0 0
      %1083 = vmatpush1.bf16.xpose.msra.mxu0 0
      %1084 = vmatprep.subr.bf16.mxu0 0
      %1085 = vmatpush1.bf16.xpose.msra.mxu0 0
      %1086 = vmatprep.subr.bf16.mxu0 0
      %1087 = vmatpush1.bf16.xpose.msra.mxu0 0
      %1088 = vmatprep.subr.bf16.mxu0 0
      %1089 = vmatpush1.bf16.xpose.msra.mxu0 0
      %1090 = vmatprep.mubr.bf16.mxu0 0
      %1091 = vmatmul.mubr.bf16.gmra.mrb[0].mxu0 %v1053
      %v1092 = vpop.f32.mrb[0].mxu0
      %v1093 = vadd.f32 %v1041, %v1092
      %v1094 = vpop.f32.mrb[0].mxu0
      %v1095 = vpop.f32.mrb[0].mxu0
      %v1096 = vpop.f32.mrb[0].mxu0
      %1097 = vdwg.mxu0
      %1099 = vrot.lane.b32.xlu0 %v1047, 96
      %v1100 = vpop.permute.xlu0 %1099
      %v1102 = vsel %vm1051, %v1045, 0
      %v1105 = vsel %vm1051, %v1100, 0
      %1107 = vmatprep.subr.bf16.mxu0 0
      %1108 = vmatpush1.bf16.xpose.msra.mxu0 %v1105
      %1109 = vmatprep.subr.bf16.mxu0 0
      %1110 = vmatpush1.bf16.xpose.msra.mxu0 0
      %1111 = vmatprep.subr.bf16.mxu0 0
      %1112 = vmatpush1.bf16.xpose.msra.mxu0 0
      %1113 = vmatprep.subr.bf16.mxu0 0
      %1114 = vmatpush1.bf16.xpose.msra.mxu0 0
      %1115 = vmatprep.subr.bf16.mxu0 0
      %1116 = vmatpush1.bf16.xpose.msra.mxu0 0
      %1117 = vmatprep.subr.bf16.mxu0 0
      %1118 = vmatpush1.bf16.xpose.msra.mxu0 0
      %1119 = vmatprep.subr.bf16.mxu0 0
      %1120 = vmatpush1.bf16.xpose.msra.mxu0 0
      %1121 = vmatprep.subr.bf16.mxu0 0
      %1122 = vmatpush1.bf16.xpose.msra.mxu0 0
      %1123 = vmatprep.subr.bf16.mxu0 0
      %1124 = vmatpush1.bf16.xpose.msra.mxu0 0
      %1125 = vmatprep.subr.bf16.mxu0 0
      %1126 = vmatpush1.bf16.xpose.msra.mxu0 0
      %1127 = vmatprep.subr.bf16.mxu0 0
      %1128 = vmatpush1.bf16.xpose.msra.mxu0 0
      %1129 = vmatprep.subr.bf16.mxu0 0
      %1130 = vmatpush1.bf16.xpose.msra.mxu0 0
      %1131 = vmatprep.subr.bf16.mxu0 0
      %1132 = vmatpush1.bf16.xpose.msra.mxu0 0
      %1133 = vmatprep.subr.bf16.mxu0 0
      %1134 = vmatpush1.bf16.xpose.msra.mxu0 0
      %1135 = vmatprep.subr.bf16.mxu0 0
      %1136 = vmatpush1.bf16.xpose.msra.mxu0 0
      %1137 = vmatprep.subr.bf16.mxu0 0
      %1138 = vmatpush1.bf16.xpose.msra.mxu0 0
      %1139 = vmatprep.mubr.bf16.mxu0 0
      %1140 = vmatmul.mubr.bf16.gmra.mrb[0].mxu0 %v1102
      %v1141 = vpop.f32.mrb[0].mxu0
      %v1142 = vadd.f32 %v1041, %v1141
      %v1143 = vpop.f32.mrb[0].mxu0
      %v1144 = vpop.f32.mrb[0].mxu0
      %v1145 = vpop.f32.mrb[0].mxu0
      %1146 = vdwg.mxu0
      %v1147 = vsel %vm1051, %v1093, -inf
      %1148 = vmax.xlane.f32.xlu0 %v1147
      %v1149 = vpop.xlane.xlu0 %1148
      %v1150 = vsel %vm1051, %v1142, -inf
      %1151 = vmax.xlane.f32.xlu0 %v1150
      %v1152 = vpop.xlane.xlu0 %1151
      %v1153 = vsub.f32 %v1093, %v1149
      %v1154 = vsub.f32 %v1142, %v1152
      %v1155 = vmul.f32 %v1153, 1.442695
      %v1156 = vpow.pop %v1155
      %v1157 = vmul.f32 %v1154, 1.442695
      %v1158 = vpow.pop %v1157
      %v1159 = vsel %vm1051, %v1156, 0.0
      %1160 = vadd.xlane.f32.xlu0 %v1159
      %v1161 = vpop.xlane.xlu0 %1160
      %v1162 = vsel %vm1051, %v1158, 0.0
      %1163 = vadd.xlane.f32.xlu0 %v1162
      %v1164 = vpop.xlane.xlu0 %1163
      %v1165 = vrcp.pop %v1161
      %v1166 = vrcp.pop %v1164
      %v1167 = vmul.f32 %v1156, %v1165
      %v1168 = vmul.f32 %v1158, %v1166
      %v1169 = vpack.c.bf16 %v1167, %v1167
      %v1170 = vpack.c.bf16 %v1168, %v1168
      %1171 = vrot.lane.b32.xlu0 %v1046, 64
      %v1172 = vpop.permute.xlu0 %1171
      %v1174 = vsel %vm1051, %v1169, 0
      %vm1176 = vcmask 1043456
      %v1178 = vsel %vm1176, %v1172, 0
      %1180 = vmatprep.subr.bf16.mxu0 0
      %1181 = vmatpush1.bf16.msra.mxu0 %v1178
      %1182 = vmatprep.subr.bf16.mxu0 0
      %1183 = vmatpush1.bf16.msra.mxu0 0
      %1184 = vmatprep.subr.bf16.mxu0 0
      %1185 = vmatpush1.bf16.msra.mxu0 0
      %1186 = vmatprep.subr.bf16.mxu0 0
      %1187 = vmatpush1.bf16.msra.mxu0 0
      %1188 = vmatprep.subr.bf16.mxu0 0
      %1189 = vmatpush1.bf16.msra.mxu0 0
      %1190 = vmatprep.subr.bf16.mxu0 0
      %1191 = vmatpush1.bf16.msra.mxu0 0
      %1192 = vmatprep.subr.bf16.mxu0 0
      %1193 = vmatpush1.bf16.msra.mxu0 0
      %1194 = vmatprep.subr.bf16.mxu0 0
      %1195 = vmatpush1.bf16.msra.mxu0 0
      %1196 = vmatprep.subr.bf16.mxu0 0
      %1197 = vmatpush1.bf16.msra.mxu0 0
      %1198 = vmatprep.subr.bf16.mxu0 0
      %1199 = vmatpush1.bf16.msra.mxu0 0
      %1200 = vmatprep.subr.bf16.mxu0 0
      %1201 = vmatpush1.bf16.msra.mxu0 0
      %1202 = vmatprep.subr.bf16.mxu0 0
      %1203 = vmatpush1.bf16.msra.mxu0 0
      %1204 = vmatprep.subr.bf16.mxu0 0
      %1205 = vmatpush1.bf16.msra.mxu0 0
      %1206 = vmatprep.subr.bf16.mxu0 0
      %1207 = vmatpush1.bf16.msra.mxu0 0
      %1208 = vmatprep.subr.bf16.mxu0 0
      %1209 = vmatpush1.bf16.msra.mxu0 0
      %1210 = vmatprep.subr.bf16.mxu0 0
      %1211 = vmatpush1.bf16.msra.mxu0 0
      %1212 = vmatprep.mubr.bf16.mxu0 0
      %1213 = vmatmul.mubr.bf16.gmra.mrb[0].mxu0 %v1174
      %v1214 = vpop.f32.mrb[0].mxu0
      %v1215 = vadd.f32 0.0, %v1214
      %v1216 = vpop.f32.mrb[0].mxu0
      %v1217 = vpop.f32.mrb[0].mxu0
      %v1218 = vpop.f32.mrb[0].mxu0
      %1219 = vdwg.mxu0
      %1220 = vrot.lane.b32.xlu0 %v1047, 64
      %v1221 = vpop.permute.xlu0 %1220
      %v1223 = vsel %vm1051, %v1170, 0
      %v1226 = vsel %vm1176, %v1221, 0
      %1228 = vmatprep.subr.bf16.mxu0 0
      %1229 = vmatpush1.bf16.msra.mxu0 %v1226
      %1230 = vmatprep.subr.bf16.mxu0 0
      %1231 = vmatpush1.bf16.msra.mxu0 0
      %1232 = vmatprep.subr.bf16.mxu0 0
      %1233 = vmatpush1.bf16.msra.mxu0 0
      %1234 = vmatprep.subr.bf16.mxu0 0
      %1235 = vmatpush1.bf16.msra.mxu0 0
      %1236 = vmatprep.subr.bf16.mxu0 0
      %1237 = vmatpush1.bf16.msra.mxu0 0
      %1238 = vmatprep.subr.bf16.mxu0 0
      %1239 = vmatpush1.bf16.msra.mxu0 0
      %1240 = vmatprep.subr.bf16.mxu0 0
      %1241 = vmatpush1.bf16.msra.mxu0 0
      %1242 = vmatprep.subr.bf16.mxu0 0
      %1243 = vmatpush1.bf16.msra.mxu0 0
      %1244 = vmatprep.subr.bf16.mxu0 0
      %1245 = vmatpush1.bf16.msra.mxu0 0
      %1246 = vmatprep.subr.bf16.mxu0 0
      %1247 = vmatpush1.bf16.msra.mxu0 0
      %1248 = vmatprep.subr.bf16.mxu0 0
      %1249 = vmatpush1.bf16.msra.mxu0 0
      %1250 = vmatprep.subr.bf16.mxu0 0
      %1251 = vmatpush1.bf16.msra.mxu0 0
      %1252 = vmatprep.subr.bf16.mxu0 0
      %1253 = vmatpush1.bf16.msra.mxu0 0
      %1254 = vmatprep.subr.bf16.mxu0 0
      %1255 = vmatpush1.bf16.msra.mxu0 0
      %1256 = vmatprep.subr.bf16.mxu0 0
      %1257 = vmatpush1.bf16.msra.mxu0 0
      %1258 = vmatprep.subr.bf16.mxu0 0
      %1259 = vmatpush1.bf16.msra.mxu0 0
      %1260 = vmatprep.mubr.bf16.mxu0 0
      %1261 = vmatmul.mubr.bf16.gmra.mrb[0].mxu0 %v1223
      %v1262 = vpop.f32.mrb[0].mxu0
      %v1263 = vadd.f32 0.0, %v1262
      %v1264 = vpop.f32.mrb[0].mxu0
      %v1265 = vpop.f32.mrb[0].mxu0
      %v1266 = vpop.f32.mrb[0].mxu0
      %1267 = vdwg.mxu0
      %1269 = vrot.lane.b32.xlu0 %v1044, 120
      %v1270 = vpop.permute.xlu0 %1269
      %1271 = vrot.lane.b32.xlu0 %v1046, 88
      %v1272 = vpop.permute.xlu0 %1271
      %v1274 = vsel %vm1051, %v1270, 0
      %v1277 = vsel %vm1051, %v1272, 0
      %1279 = vmatprep.subr.bf16.mxu0 0
      %1280 = vmatpush1.bf16.xpose.msra.mxu0 %v1277
      %1281 = vmatprep.subr.bf16.mxu0 0
      %1282 = vmatpush1.bf16.xpose.msra.mxu0 0
      %1283 = vmatprep.subr.bf16.mxu0 0
      %1284 = vmatpush1.bf16.xpose.msra.mxu0 0
      %1285 = vmatprep.subr.bf16.mxu0 0
      %1286 = vmatpush1.bf16.xpose.msra.mxu0 0
      %1287 = vmatprep.subr.bf16.mxu0 0
      %1288 = vmatpush1.bf16.xpose.msra.mxu0 0
      %1289 = vmatprep.subr.bf16.mxu0 0
      %1290 = vmatpush1.bf16.xpose.msra.mxu0 0
      %1291 = vmatprep.subr.bf16.mxu0 0
      %1292 = vmatpush1.bf16.xpose.msra.mxu0 0
      %1293 = vmatprep.subr.bf16.mxu0 0
      %1294 = vmatpush1.bf16.xpose.msra.mxu0 0
      %1295 = vmatprep.subr.bf16.mxu0 0
      %1296 = vmatpush1.bf16.xpose.msra.mxu0 0
      %1297 = vmatprep.subr.bf16.mxu0 0
      %1298 = vmatpush1.bf16.xpose.msra.mxu0 0
      %1299 = vmatprep.subr.bf16.mxu0 0
      %1300 = vmatpush1.bf16.xpose.msra.mxu0 0
      %1301 = vmatprep.subr.bf16.mxu0 0
      %1302 = vmatpush1.bf16.xpose.msra.mxu0 0
      %1303 = vmatprep.subr.bf16.mxu0 0
      %1304 = vmatpush1.bf16.xpose.msra.mxu0 0
      %1305 = vmatprep.subr.bf16.mxu0 0
      %1306 = vmatpush1.bf16.xpose.msra.mxu0 0
      %1307 = vmatprep.subr.bf16.mxu0 0
      %1308 = vmatpush1.bf16.xpose.msra.mxu0 0
      %1309 = vmatprep.subr.bf16.mxu0 0
      %1310 = vmatpush1.bf16.xpose.msra.mxu0 0
      %1311 = vmatprep.mubr.bf16.mxu0 0
      %1312 = vmatmul.mubr.bf16.gmra.mrb[0].mxu0 %v1274
      %v1313 = vpop.f32.mrb[0].mxu0
      %v1314 = vadd.f32 %v1041, %v1313
      %v1315 = vpop.f32.mrb[0].mxu0
      %v1316 = vpop.f32.mrb[0].mxu0
      %v1317 = vpop.f32.mrb[0].mxu0
      %1318 = vdwg.mxu0
      %1320 = vrot.lane.b32.xlu0 %v1045, 120
      %v1321 = vpop.permute.xlu0 %1320
      %1322 = vrot.lane.b32.xlu0 %v1047, 88
      %v1323 = vpop.permute.xlu0 %1322
      %v1325 = vsel %vm1051, %v1321, 0
      %v1328 = vsel %vm1051, %v1323, 0
      %1330 = vmatprep.subr.bf16.mxu0 0
      %1331 = vmatpush1.bf16.xpose.msra.mxu0 %v1328
      %1332 = vmatprep.subr.bf16.mxu0 0
      %1333 = vmatpush1.bf16.xpose.msra.mxu0 0
      %1334 = vmatprep.subr.bf16.mxu0 0
      %1335 = vmatpush1.bf16.xpose.msra.mxu0 0
      %1336 = vmatprep.subr.bf16.mxu0 0
      %1337 = vmatpush1.bf16.xpose.msra.mxu0 0
      %1338 = vmatprep.subr.bf16.mxu0 0
      %1339 = vmatpush1.bf16.xpose.msra.mxu0 0
      %1340 = vmatprep.subr.bf16.mxu0 0
      %1341 = vmatpush1.bf16.xpose.msra.mxu0 0
      %1342 = vmatprep.subr.bf16.mxu0 0
      %1343 = vmatpush1.bf16.xpose.msra.mxu0 0
      %1344 = vmatprep.subr.bf16.mxu0 0
      %1345 = vmatpush1.bf16.xpose.msra.mxu0 0
      %1346 = vmatprep.subr.bf16.mxu0 0
      %1347 = vmatpush1.bf16.xpose.msra.mxu0 0
      %1348 = vmatprep.subr.bf16.mxu0 0
      %1349 = vmatpush1.bf16.xpose.msra.mxu0 0
      %1350 = vmatprep.subr.bf16.mxu0 0
      %1351 = vmatpush1.bf16.xpose.msra.mxu0 0
      %1352 = vmatprep.subr.bf16.mxu0 0
      %1353 = vmatpush1.bf16.xpose.msra.mxu0 0
      %1354 = vmatprep.subr.bf16.mxu0 0
      %1355 = vmatpush1.bf16.xpose.msra.mxu0 0
      %1356 = vmatprep.subr.bf16.mxu0 0
      %1357 = vmatpush1.bf16.xpose.msra.mxu0 0
      %1358 = vmatprep.subr.bf16.mxu0 0
      %1359 = vmatpush1.bf16.xpose.msra.mxu0 0
      %1360 = vmatprep.subr.bf16.mxu0 0
      %1361 = vmatpush1.bf16.xpose.msra.mxu0 0
      %1362 = vmatprep.mubr.bf16.mxu0 0
      %1363 = vmatmul.mubr.bf16.gmra.mrb[0].mxu0 %v1325
      %v1364 = vpop.f32.mrb[0].mxu0
      %v1365 = vadd.f32 %v1041, %v1364
      %v1366 = vpop.f32.mrb[0].mxu0
      %v1367 = vpop.f32.mrb[0].mxu0
      %v1368 = vpop.f32.mrb[0].mxu0
      %1369 = vdwg.mxu0
      %v1370 = vsel %vm1051, %v1314, -inf
      %1371 = vmax.xlane.f32.xlu0 %v1370
      %v1372 = vpop.xlane.xlu0 %1371
      %v1373 = vsel %vm1051, %v1365, -inf
      %1374 = vmax.xlane.f32.xlu0 %v1373
      %v1375 = vpop.xlane.xlu0 %1374
      %v1376 = vsub.f32 %v1314, %v1372
      %v1377 = vsub.f32 %v1365, %v1375
      %v1378 = vmul.f32 %v1376, 1.442695
      %v1379 = vpow.pop %v1378
      %v1380 = vmul.f32 %v1377, 1.442695
      %v1381 = vpow.pop %v1380
      %v1382 = vsel %vm1051, %v1379, 0.0
      %1383 = vadd.xlane.f32.xlu0 %v1382
      %v1384 = vpop.xlane.xlu0 %1383
      %v1385 = vsel %vm1051, %v1381, 0.0
      %1386 = vadd.xlane.f32.xlu0 %v1385
      %v1387 = vpop.xlane.xlu0 %1386
      %v1388 = vrcp.pop %v1384
      %v1389 = vrcp.pop %v1387
      %v1390 = vmul.f32 %v1379, %v1388
      %v1391 = vmul.f32 %v1381, %v1389
      %v1392 = vpack.c.bf16 %v1390, %v1390
      %v1393 = vpack.c.bf16 %v1391, %v1391
      %1394 = vrot.lane.b32.xlu0 %v1046, 56
      %v1395 = vpop.permute.xlu0 %1394
      %v1397 = vsel %vm1051, %v1392, 0
      %v1400 = vsel %vm1176, %v1395, 0
      %1402 = vmatprep.subr.bf16.mxu0 0
      %1403 = vmatpush1.bf16.msra.mxu0 %v1400
      %1404 = vmatprep.subr.bf16.mxu0 0
      %1405 = vmatpush1.bf16.msra.mxu0 0
      %1406 = vmatprep.subr.bf16.mxu0 0
      %1407 = vmatpush1.bf16.msra.mxu0 0
      %1408 = vmatprep.subr.bf16.mxu0 0
      %1409 = vmatpush1.bf16.msra.mxu0 0
      %1410 = vmatprep.subr.bf16.mxu0 0
      %1411 = vmatpush1.bf16.msra.mxu0 0
      %1412 = vmatprep.subr.bf16.mxu0 0
      %1413 = vmatpush1.bf16.msra.mxu0 0
      %1414 = vmatprep.subr.bf16.mxu0 0
      %1415 = vmatpush1.bf16.msra.mxu0 0
      %1416 = vmatprep.subr.bf16.mxu0 0
      %1417 = vmatpush1.bf16.msra.mxu0 0
      %1418 = vmatprep.subr.bf16.mxu0 0
      %1419 = vmatpush1.bf16.msra.mxu0 0
      %1420 = vmatprep.subr.bf16.mxu0 0
      %1421 = vmatpush1.bf16.msra.mxu0 0
      %1422 = vmatprep.subr.bf16.mxu0 0
      %1423 = vmatpush1.bf16.msra.mxu0 0
      %1424 = vmatprep.subr.bf16.mxu0 0
      %1425 = vmatpush1.bf16.msra.mxu0 0
      %1426 = vmatprep.subr.bf16.mxu0 0
      %1427 = vmatpush1.bf16.msra.mxu0 0
      %1428 = vmatprep.subr.bf16.mxu0 0
      %1429 = vmatpush1.bf16.msra.mxu0 0
      %1430 = vmatprep.subr.bf16.mxu0 0
      %1431 = vmatpush1.bf16.msra.mxu0 0
      %1432 = vmatprep.subr.bf16.mxu0 0
      %1433 = vmatpush1.bf16.msra.mxu0 0
      %1434 = vmatprep.mubr.bf16.mxu0 0
      %1435 = vmatmul.mubr.bf16.gmra.mrb[0].mxu0 %v1397
      %v1436 = vpop.f32.mrb[0].mxu0
      %v1437 = vadd.f32 0.0, %v1436
      %v1438 = vpop.f32.mrb[0].mxu0
      %v1439 = vpop.f32.mrb[0].mxu0
      %v1440 = vpop.f32.mrb[0].mxu0
      %1441 = vdwg.mxu0
      %1442 = vrot.lane.b32.xlu0 %v1047, 56
      %v1443 = vpop.permute.xlu0 %1442
      %v1445 = vsel %vm1051, %v1393, 0
      %v1448 = vsel %vm1176, %v1443, 0
      %1450 = vmatprep.subr.bf16.mxu0 0
      %1451 = vmatpush1.bf16.msra.mxu0 %v1448
      %1452 = vmatprep.subr.bf16.mxu0 0
      %1453 = vmatpush1.bf16.msra.mxu0 0
      %1454 = vmatprep.subr.bf16.mxu0 0
      %1455 = vmatpush1.bf16.msra.mxu0 0
      %1456 = vmatprep.subr.bf16.mxu0 0
      %1457 = vmatpush1.bf16.msra.mxu0 0
      %1458 = vmatprep.subr.bf16.mxu0 0
      %1459 = vmatpush1.bf16.msra.mxu0 0
      %1460 = vmatprep.subr.bf16.mxu0 0
      %1461 = vmatpush1.bf16.msra.mxu0 0
      %1462 = vmatprep.subr.bf16.mxu0 0
      %1463 = vmatpush1.bf16.msra.mxu0 0
      %1464 = vmatprep.subr.bf16.mxu0 0
      %1465 = vmatpush1.bf16.msra.mxu0 0
      %1466 = vmatprep.subr.bf16.mxu0 0
      %1467 = vmatpush1.bf16.msra.mxu0 0
      %1468 = vmatprep.subr.bf16.mxu0 0
      %1469 = vmatpush1.bf16.msra.mxu0 0
      %1470 = vmatprep.subr.bf16.mxu0 0
      %1471 = vmatpush1.bf16.msra.mxu0 0
      %1472 = vmatprep.subr.bf16.mxu0 0
      %1473 = vmatpush1.bf16.msra.mxu0 0
      %1474 = vmatprep.subr.bf16.mxu0 0
      %1475 = vmatpush1.bf16.msra.mxu0 0
      %1476 = vmatprep.subr.bf16.mxu0 0
      %1477 = vmatpush1.bf16.msra.mxu0 0
      %1478 = vmatprep.subr.bf16.mxu0 0
      %1479 = vmatpush1.bf16.msra.mxu0 0
      %1480 = vmatprep.subr.bf16.mxu0 0
      %1481 = vmatpush1.bf16.msra.mxu0 0
      %1482 = vmatprep.mubr.bf16.mxu0 0
      %1483 = vmatmul.mubr.bf16.gmra.mrb[0].mxu0 %v1445
      %v1484 = vpop.f32.mrb[0].mxu0
      %v1485 = vadd.f32 0.0, %v1484
      %v1486 = vpop.f32.mrb[0].mxu0
      %v1487 = vpop.f32.mrb[0].mxu0
      %v1488 = vpop.f32.mrb[0].mxu0
      %1489 = vdwg.mxu0
      %1490 = vrot.lane.b32.xlu0 %v1044, 112
      %v1491 = vpop.permute.xlu0 %1490
      %1492 = vrot.lane.b32.xlu0 %v1046, 80
      %v1493 = vpop.permute.xlu0 %1492
      %v1495 = vsel %vm1051, %v1491, 0
      %v1498 = vsel %vm1051, %v1493, 0
      %1500 = vmatprep.subr.bf16.mxu0 0
      %1501 = vmatpush1.bf16.xpose.msra.mxu0 %v1498
      %1502 = vmatprep.subr.bf16.mxu0 0
      %1503 = vmatpush1.bf16.xpose.msra.mxu0 0
      %1504 = vmatprep.subr.bf16.mxu0 0
      %1505 = vmatpush1.bf16.xpose.msra.mxu0 0
      %1506 = vmatprep.subr.bf16.mxu0 0
      %1507 = vmatpush1.bf16.xpose.msra.mxu0 0
      %1508 = vmatprep.subr.bf16.mxu0 0
      %1509 = vmatpush1.bf16.xpose.msra.mxu0 0
      %1510 = vmatprep.subr.bf16.mxu0 0
      %1511 = vmatpush1.bf16.xpose.msra.mxu0 0
      %1512 = vmatprep.subr.bf16.mxu0 0
      %1513 = vmatpush1.bf16.xpose.msra.mxu0 0
      %1514 = vmatprep.subr.bf16.mxu0 0
      %1515 = vmatpush1.bf16.xpose.msra.mxu0 0
      %1516 = vmatprep.subr.bf16.mxu0 0
      %1517 = vmatpush1.bf16.xpose.msra.mxu0 0
      %1518 = vmatprep.subr.bf16.mxu0 0
      %1519 = vmatpush1.bf16.xpose.msra.mxu0 0
      %1520 = vmatprep.subr.bf16.mxu0 0
      %1521 = vmatpush1.bf16.xpose.msra.mxu0 0
      %1522 = vmatprep.subr.bf16.mxu0 0
      %1523 = vmatpush1.bf16.xpose.msra.mxu0 0
      %1524 = vmatprep.subr.bf16.mxu0 0
      %1525 = vmatpush1.bf16.xpose.msra.mxu0 0
      %1526 = vmatprep.subr.bf16.mxu0 0
      %1527 = vmatpush1.bf16.xpose.msra.mxu0 0
      %1528 = vmatprep.subr.bf16.mxu0 0
      %1529 = vmatpush1.bf16.xpose.msra.mxu0 0
      %1530 = vmatprep.subr.bf16.mxu0 0
      %1531 = vmatpush1.bf16.xpose.msra.mxu0 0
      %1532 = vmatprep.mubr.bf16.mxu0 0
      %1533 = vmatmul.mubr.bf16.gmra.mrb[0].mxu0 %v1495
      %v1534 = vpop.f32.mrb[0].mxu0
      %v1535 = vadd.f32 %v1041, %v1534
      %v1536 = vpop.f32.mrb[0].mxu0
      %v1537 = vpop.f32.mrb[0].mxu0
      %v1538 = vpop.f32.mrb[0].mxu0
      %1539 = vdwg.mxu0
      %1540 = vrot.lane.b32.xlu0 %v1045, 112
      %v1541 = vpop.permute.xlu0 %1540
      %1542 = vrot.lane.b32.xlu0 %v1047, 80
      %v1543 = vpop.permute.xlu0 %1542
      %v1545 = vsel %vm1051, %v1541, 0
      %v1548 = vsel %vm1051, %v1543, 0
      %1550 = vmatprep.subr.bf16.mxu0 0
      %1551 = vmatpush1.bf16.xpose.msra.mxu0 %v1548
      %1552 = vmatprep.subr.bf16.mxu0 0
      %1553 = vmatpush1.bf16.xpose.msra.mxu0 0
      %1554 = vmatprep.subr.bf16.mxu0 0
      %1555 = vmatpush1.bf16.xpose.msra.mxu0 0
      %1556 = vmatprep.subr.bf16.mxu0 0
      %1557 = vmatpush1.bf16.xpose.msra.mxu0 0
      %1558 = vmatprep.subr.bf16.mxu0 0
      %1559 = vmatpush1.bf16.xpose.msra.mxu0 0
      %1560 = vmatprep.subr.bf16.mxu0 0
      %1561 = vmatpush1.bf16.xpose.msra.mxu0 0
      %1562 = vmatprep.subr.bf16.mxu0 0
      %1563 = vmatpush1.bf16.xpose.msra.mxu0 0
      %1564 = vmatprep.subr.bf16.mxu0 0
      %1565 = vmatpush1.bf16.xpose.msra.mxu0 0
      %1566 = vmatprep.subr.bf16.mxu0 0
      %1567 = vmatpush1.bf16.xpose.msra.mxu0 0
      %1568 = vmatprep.subr.bf16.mxu0 0
      %1569 = vmatpush1.bf16.xpose.msra.mxu0 0
      %1570 = vmatprep.subr.bf16.mxu0 0
      %1571 = vmatpush1.bf16.xpose.msra.mxu0 0
      %1572 = vmatprep.subr.bf16.mxu0 0
      %1573 = vmatpush1.bf16.xpose.msra.mxu0 0
      %1574 = vmatprep.subr.bf16.mxu0 0
      %1575 = vmatpush1.bf16.xpose.msra.mxu0 0
      %1576 = vmatprep.subr.bf16.mxu0 0
      %1577 = vmatpush1.bf16.xpose.msra.mxu0 0
      %1578 = vmatprep.subr.bf16.mxu0 0
      %1579 = vmatpush1.bf16.xpose.msra.mxu0 0
      %1580 = vmatprep.subr.bf16.mxu0 0
      %1581 = vmatpush1.bf16.xpose.msra.mxu0 0
      %1582 = vmatprep.mubr.bf16.mxu0 0
      %1583 = vmatmul.mubr.bf16.gmra.mrb[0].mxu0 %v1545
      %v1584 = vpop.f32.mrb[0].mxu0
      %v1585 = vadd.f32 %v1041, %v1584
      %v1586 = vpop.f32.mrb[0].mxu0
      %v1587 = vpop.f32.mrb[0].mxu0
      %v1588 = vpop.f32.mrb[0].mxu0
      %1589 = vdwg.mxu0
      %v1590 = vsel %vm1051, %v1535, -inf
      %1591 = vmax.xlane.f32.xlu0 %v1590
      %v1592 = vpop.xlane.xlu0 %1591
      %v1593 = vsel %vm1051, %v1585, -inf
      %1594 = vmax.xlane.f32.xlu0 %v1593
      %v1595 = vpop.xlane.xlu0 %1594
      %v1596 = vsub.f32 %v1535, %v1592
      %v1597 = vsub.f32 %v1585, %v1595
      %v1598 = vmul.f32 %v1596, 1.442695
      %v1599 = vpow.pop %v1598
      %v1600 = vmul.f32 %v1597, 1.442695
      %v1601 = vpow.pop %v1600
      %v1602 = vsel %vm1051, %v1599, 0.0
      %1603 = vadd.xlane.f32.xlu0 %v1602
      %v1604 = vpop.xlane.xlu0 %1603
      %v1605 = vsel %vm1051, %v1601, 0.0
      %1606 = vadd.xlane.f32.xlu0 %v1605
      %v1607 = vpop.xlane.xlu0 %1606
      %v1608 = vrcp.pop %v1604
      %v1609 = vrcp.pop %v1607
      %v1610 = vmul.f32 %v1599, %v1608
      %v1611 = vmul.f32 %v1601, %v1609
      %v1612 = vpack.c.bf16 %v1610, %v1610
      %v1613 = vpack.c.bf16 %v1611, %v1611
      %1614 = vrot.lane.b32.xlu0 %v1046, 48
      %v1615 = vpop.permute.xlu0 %1614
      %v1617 = vsel %vm1051, %v1612, 0
      %v1620 = vsel %vm1176, %v1615, 0
      %1622 = vmatprep.subr.bf16.mxu0 0
      %1623 = vmatpush1.bf16.msra.mxu0 %v1620
      %1624 = vmatprep.subr.bf16.mxu0 0
      %1625 = vmatpush1.bf16.msra.mxu0 0
      %1626 = vmatprep.subr.bf16.mxu0 0
      %1627 = vmatpush1.bf16.msra.mxu0 0
      %1628 = vmatprep.subr.bf16.mxu0 0
      %1629 = vmatpush1.bf16.msra.mxu0 0
      %1630 = vmatprep.subr.bf16.mxu0 0
      %1631 = vmatpush1.bf16.msra.mxu0 0
      %1632 = vmatprep.subr.bf16.mxu0 0
      %1633 = vmatpush1.bf16.msra.mxu0 0
      %1634 = vmatprep.subr.bf16.mxu0 0
      %1635 = vmatpush1.bf16.msra.mxu0 0
      %1636 = vmatprep.subr.bf16.mxu0 0
      %1637 = vmatpush1.bf16.msra.mxu0 0
      %1638 = vmatprep.subr.bf16.mxu0 0
      %1639 = vmatpush1.bf16.msra.mxu0 0
      %1640 = vmatprep.subr.bf16.mxu0 0
      %1641 = vmatpush1.bf16.msra.mxu0 0
      %1642 = vmatprep.subr.bf16.mxu0 0
      %1643 = vmatpush1.bf16.msra.mxu0 0
      %1644 = vmatprep.subr.bf16.mxu0 0
      %1645 = vmatpush1.bf16.msra.mxu0 0
      %1646 = vmatprep.subr.bf16.mxu0 0
      %1647 = vmatpush1.bf16.msra.mxu0 0
      %1648 = vmatprep.subr.bf16.mxu0 0
      %1649 = vmatpush1.bf16.msra.mxu0 0
      %1650 = vmatprep.subr.bf16.mxu0 0
      %1651 = vmatpush1.bf16.msra.mxu0 0
      %1652 = vmatprep.subr.bf16.mxu0 0
      %1653 = vmatpush1.bf16.msra.mxu0 0
      %1654 = vmatprep.mubr.bf16.mxu0 0
      %1655 = vmatmul.mubr.bf16.gmra.mrb[0].mxu0 %v1617
      %v1656 = vpop.f32.mrb[0].mxu0
      %v1657 = vadd.f32 0.0, %v1656
      %v1658 = vpop.f32.mrb[0].mxu0
      %v1659 = vpop.f32.mrb[0].mxu0
      %v1660 = vpop.f32.mrb[0].mxu0
      %1661 = vdwg.mxu0
      %1662 = vrot.lane.b32.xlu0 %v1047, 48
      %v1663 = vpop.permute.xlu0 %1662
      %v1665 = vsel %vm1051, %v1613, 0
      %v1668 = vsel %vm1176, %v1663, 0
      %1670 = vmatprep.subr.bf16.mxu0 0
      %1671 = vmatpush1.bf16.msra.mxu0 %v1668
      %1672 = vmatprep.subr.bf16.mxu0 0
      %1673 = vmatpush1.bf16.msra.mxu0 0
      %1674 = vmatprep.subr.bf16.mxu0 0
      %1675 = vmatpush1.bf16.msra.mxu0 0
      %1676 = vmatprep.subr.bf16.mxu0 0
      %1677 = vmatpush1.bf16.msra.mxu0 0
      %1678 = vmatprep.subr.bf16.mxu0 0
      %1679 = vmatpush1.bf16.msra.mxu0 0
      %1680 = vmatprep.subr.bf16.mxu0 0
      %1681 = vmatpush1.bf16.msra.mxu0 0
      %1682 = vmatprep.subr.bf16.mxu0 0
      %1683 = vmatpush1.bf16.msra.mxu0 0
      %1684 = vmatprep.subr.bf16.mxu0 0
      %1685 = vmatpush1.bf16.msra.mxu0 0
      %1686 = vmatprep.subr.bf16.mxu0 0
      %1687 = vmatpush1.bf16.msra.mxu0 0
      %1688 = vmatprep.subr.bf16.mxu0 0
      %1689 = vmatpush1.bf16.msra.mxu0 0
      %1690 = vmatprep.subr.bf16.mxu0 0
      %1691 = vmatpush1.bf16.msra.mxu0 0
      %1692 = vmatprep.subr.bf16.mxu0 0
      %1693 = vmatpush1.bf16.msra.mxu0 0
      %1694 = vmatprep.subr.bf16.mxu0 0
      %1695 = vmatpush1.bf16.msra.mxu0 0
      %1696 = vmatprep.subr.bf16.mxu0 0
      %1697 = vmatpush1.bf16.msra.mxu0 0
      %1698 = vmatprep.subr.bf16.mxu0 0
      %1699 = vmatpush1.bf16.msra.mxu0 0
      %1700 = vmatprep.subr.bf16.mxu0 0
      %1701 = vmatpush1.bf16.msra.mxu0 0
      %1702 = vmatprep.mubr.bf16.mxu0 0
      %1703 = vmatmul.mubr.bf16.gmra.mrb[0].mxu0 %v1665
      %v1704 = vpop.f32.mrb[0].mxu0
      %v1705 = vadd.f32 0.0, %v1704
      %v1706 = vpop.f32.mrb[0].mxu0
      %v1707 = vpop.f32.mrb[0].mxu0
      %v1708 = vpop.f32.mrb[0].mxu0
      %1709 = vdwg.mxu0
      %1710 = vrot.lane.b32.xlu0 %v1044, 104
      %v1711 = vpop.permute.xlu0 %1710
      %1712 = vrot.lane.b32.xlu0 %v1046, 72
      %v1713 = vpop.permute.xlu0 %1712
      %v1715 = vsel %vm1051, %v1711, 0
      %v1718 = vsel %vm1051, %v1713, 0
      %1720 = vmatprep.subr.bf16.mxu0 0
      %1721 = vmatpush1.bf16.xpose.msra.mxu0 %v1718
      %1722 = vmatprep.subr.bf16.mxu0 0
      %1723 = vmatpush1.bf16.xpose.msra.mxu0 0
      %1724 = vmatprep.subr.bf16.mxu0 0
      %1725 = vmatpush1.bf16.xpose.msra.mxu0 0
      %1726 = vmatprep.subr.bf16.mxu0 0
      %1727 = vmatpush1.bf16.xpose.msra.mxu0 0
      %1728 = vmatprep.subr.bf16.mxu0 0
      %1729 = vmatpush1.bf16.xpose.msra.mxu0 0
      %1730 = vmatprep.subr.bf16.mxu0 0
      %1731 = vmatpush1.bf16.xpose.msra.mxu0 0
      %1732 = vmatprep.subr.bf16.mxu0 0
      %1733 = vmatpush1.bf16.xpose.msra.mxu0 0
      %1734 = vmatprep.subr.bf16.mxu0 0
      %1735 = vmatpush1.bf16.xpose.msra.mxu0 0
      %1736 = vmatprep.subr.bf16.mxu0 0
      %1737 = vmatpush1.bf16.xpose.msra.mxu0 0
      %1738 = vmatprep.subr.bf16.mxu0 0
      %1739 = vmatpush1.bf16.xpose.msra.mxu0 0
      %1740 = vmatprep.subr.bf16.mxu0 0
      %1741 = vmatpush1.bf16.xpose.msra.mxu0 0
      %1742 = vmatprep.subr.bf16.mxu0 0
      %1743 = vmatpush1.bf16.xpose.msra.mxu0 0
      %1744 = vmatprep.subr.bf16.mxu0 0
      %1745 = vmatpush1.bf16.xpose.msra.mxu0 0
      %1746 = vmatprep.subr.bf16.mxu0 0
      %1747 = vmatpush1.bf16.xpose.msra.mxu0 0
      %1748 = vmatprep.subr.bf16.mxu0 0
      %1749 = vmatpush1.bf16.xpose.msra.mxu0 0
      %1750 = vmatprep.subr.bf16.mxu0 0
      %1751 = vmatpush1.bf16.xpose.msra.mxu0 0
      %1752 = vmatprep.mubr.bf16.mxu0 0
      %1753 = vmatmul.mubr.bf16.gmra.mrb[0].mxu0 %v1715
      %v1754 = vpop.f32.mrb[0].mxu0
      %v1755 = vadd.f32 %v1041, %v1754
      %v1756 = vpop.f32.mrb[0].mxu0
      %v1757 = vpop.f32.mrb[0].mxu0
      %v1758 = vpop.f32.mrb[0].mxu0
      %1759 = vdwg.mxu0
      %1760 = vrot.lane.b32.xlu0 %v1045, 104
      %v1761 = vpop.permute.xlu0 %1760
      %1762 = vrot.lane.b32.xlu0 %v1047, 72
      %v1763 = vpop.permute.xlu0 %1762
      %v1765 = vsel %vm1051, %v1761, 0
      %v1768 = vsel %vm1051, %v1763, 0
      %1770 = vmatprep.subr.bf16.mxu0 0
      %1771 = vmatpush1.bf16.xpose.msra.mxu0 %v1768
      %1772 = vmatprep.subr.bf16.mxu0 0
      %1773 = vmatpush1.bf16.xpose.msra.mxu0 0
      %1774 = vmatprep.subr.bf16.mxu0 0
      %1775 = vmatpush1.bf16.xpose.msra.mxu0 0
      %1776 = vmatprep.subr.bf16.mxu0 0
      %1777 = vmatpush1.bf16.xpose.msra.mxu0 0
      %1778 = vmatprep.subr.bf16.mxu0 0
      %1779 = vmatpush1.bf16.xpose.msra.mxu0 0
      %1780 = vmatprep.subr.bf16.mxu0 0
      %1781 = vmatpush1.bf16.xpose.msra.mxu0 0
      %1782 = vmatprep.subr.bf16.mxu0 0
      %1783 = vmatpush1.bf16.xpose.msra.mxu0 0
      %1784 = vmatprep.subr.bf16.mxu0 0
      %1785 = vmatpush1.bf16.xpose.msra.mxu0 0
      %1786 = vmatprep.subr.bf16.mxu0 0
      %1787 = vmatpush1.bf16.xpose.msra.mxu0 0
      %1788 = vmatprep.subr.bf16.mxu0 0
      %1789 = vmatpush1.bf16.xpose.msra.mxu0 0
      %1790 = vmatprep.subr.bf16.mxu0 0
      %1791 = vmatpush1.bf16.xpose.msra.mxu0 0
      %1792 = vmatprep.subr.bf16.mxu0 0
      %1793 = vmatpush1.bf16.xpose.msra.mxu0 0
      %1794 = vmatprep.subr.bf16.mxu0 0
      %1795 = vmatpush1.bf16.xpose.msra.mxu0 0
      %1796 = vmatprep.subr.bf16.mxu0 0
      %1797 = vmatpush1.bf16.xpose.msra.mxu0 0
      %1798 = vmatprep.subr.bf16.mxu0 0
      %1799 = vmatpush1.bf16.xpose.msra.mxu0 0
      %1800 = vmatprep.subr.bf16.mxu0 0
      %1801 = vmatpush1.bf16.xpose.msra.mxu0 0
      %1802 = vmatprep.mubr.bf16.mxu0 0
      %1803 = vmatmul.mubr.bf16.gmra.mrb[0].mxu0 %v1765
      %v1804 = vpop.f32.mrb[0].mxu0
      %v1805 = vadd.f32 %v1041, %v1804
      %v1806 = vpop.f32.mrb[0].mxu0
      %v1807 = vpop.f32.mrb[0].mxu0
      %v1808 = vpop.f32.mrb[0].mxu0
      %1809 = vdwg.mxu0
      %v1810 = vsel %vm1051, %v1755, -inf
      %1811 = vmax.xlane.f32.xlu0 %v1810
      %v1812 = vpop.xlane.xlu0 %1811
      %v1813 = vsel %vm1051, %v1805, -inf
      %1814 = vmax.xlane.f32.xlu0 %v1813
      %v1815 = vpop.xlane.xlu0 %1814
      %v1816 = vsub.f32 %v1755, %v1812
      %v1817 = vsub.f32 %v1805, %v1815
      %v1818 = vmul.f32 %v1816, 1.442695
      %v1819 = vpow.pop %v1818
      %v1820 = vmul.f32 %v1817, 1.442695
      %v1821 = vpow.pop %v1820
      %v1822 = vsel %vm1051, %v1819, 0.0
      %1823 = vadd.xlane.f32.xlu0 %v1822
      %v1824 = vpop.xlane.xlu0 %1823
      %v1825 = vsel %vm1051, %v1821, 0.0
      %1826 = vadd.xlane.f32.xlu0 %v1825
      %v1827 = vpop.xlane.xlu0 %1826
      %v1828 = vrcp.pop %v1824
      %v1829 = vrcp.pop %v1827
      %v1830 = vmul.f32 %v1819, %v1828
      %v1831 = vmul.f32 %v1821, %v1829
      %v1832 = vpack.c.bf16 %v1830, %v1830
      %v1833 = vpack.c.bf16 %v1831, %v1831
      %1834 = vrot.lane.b32.xlu0 %v1046, 40
      %v1835 = vpop.permute.xlu0 %1834
      %v1837 = vsel %vm1051, %v1832, 0
      %v1840 = vsel %vm1176, %v1835, 0
      %1842 = vmatprep.subr.bf16.mxu0 0
      %1843 = vmatpush1.bf16.msra.mxu0 %v1840
      %1844 = vmatprep.subr.bf16.mxu0 0
      %1845 = vmatpush1.bf16.msra.mxu0 0
      %1846 = vmatprep.subr.bf16.mxu0 0
      %1847 = vmatpush1.bf16.msra.mxu0 0
      %1848 = vmatprep.subr.bf16.mxu0 0
      %1849 = vmatpush1.bf16.msra.mxu0 0
      %1850 = vmatprep.subr.bf16.mxu0 0
      %1851 = vmatpush1.bf16.msra.mxu0 0
      %1852 = vmatprep.subr.bf16.mxu0 0
      %1853 = vmatpush1.bf16.msra.mxu0 0
      %1854 = vmatprep.subr.bf16.mxu0 0
      %1855 = vmatpush1.bf16.msra.mxu0 0
      %1856 = vmatprep.subr.bf16.mxu0 0
      %1857 = vmatpush1.bf16.msra.mxu0 0
      %1858 = vmatprep.subr.bf16.mxu0 0
      %1859 = vmatpush1.bf16.msra.mxu0 0
      %1860 = vmatprep.subr.bf16.mxu0 0
      %1861 = vmatpush1.bf16.msra.mxu0 0
      %1862 = vmatprep.subr.bf16.mxu0 0
      %1863 = vmatpush1.bf16.msra.mxu0 0
      %1864 = vmatprep.subr.bf16.mxu0 0
      %1865 = vmatpush1.bf16.msra.mxu0 0
      %1866 = vmatprep.subr.bf16.mxu0 0
      %1867 = vmatpush1.bf16.msra.mxu0 0
      %1868 = vmatprep.subr.bf16.mxu0 0
      %1869 = vmatpush1.bf16.msra.mxu0 0
      %1870 = vmatprep.subr.bf16.mxu0 0
      %1871 = vmatpush1.bf16.msra.mxu0 0
      %1872 = vmatprep.subr.bf16.mxu0 0
      %1873 = vmatpush1.bf16.msra.mxu0 0
      %1874 = vmatprep.mubr.bf16.mxu0 0
      %1875 = vmatmul.mubr.bf16.gmra.mrb[0].mxu0 %v1837
      %v1876 = vpop.f32.mrb[0].mxu0
      %v1877 = vadd.f32 0.0, %v1876
      %v1878 = vpop.f32.mrb[0].mxu0
      %v1879 = vpop.f32.mrb[0].mxu0
      %v1880 = vpop.f32.mrb[0].mxu0
      %1881 = vdwg.mxu0
      %1882 = vrot.lane.b32.xlu0 %v1047, 40
      %v1883 = vpop.permute.xlu0 %1882
      %v1885 = vsel %vm1051, %v1833, 0
      %v1888 = vsel %vm1176, %v1883, 0
      %1890 = vmatprep.subr.bf16.mxu0 0
      %1891 = vmatpush1.bf16.msra.mxu0 %v1888
      %1892 = vmatprep.subr.bf16.mxu0 0
      %1893 = vmatpush1.bf16.msra.mxu0 0
      %1894 = vmatprep.subr.bf16.mxu0 0
      %1895 = vmatpush1.bf16.msra.mxu0 0
      %1896 = vmatprep.subr.bf16.mxu0 0
      %1897 = vmatpush1.bf16.msra.mxu0 0
      %1898 = vmatprep.subr.bf16.mxu0 0
      %1899 = vmatpush1.bf16.msra.mxu0 0
      %1900 = vmatprep.subr.bf16.mxu0 0
      %1901 = vmatpush1.bf16.msra.mxu0 0
      %1902 = vmatprep.subr.bf16.mxu0 0
      %1903 = vmatpush1.bf16.msra.mxu0 0
      %1904 = vmatprep.subr.bf16.mxu0 0
      %1905 = vmatpush1.bf16.msra.mxu0 0
      %1906 = vmatprep.subr.bf16.mxu0 0
      %1907 = vmatpush1.bf16.msra.mxu0 0
      %1908 = vmatprep.subr.bf16.mxu0 0
      %1909 = vmatpush1.bf16.msra.mxu0 0
      %1910 = vmatprep.subr.bf16.mxu0 0
      %1911 = vmatpush1.bf16.msra.mxu0 0
      %1912 = vmatprep.subr.bf16.mxu0 0
      %1913 = vmatpush1.bf16.msra.mxu0 0
      %1914 = vmatprep.subr.bf16.mxu0 0
      %1915 = vmatpush1.bf16.msra.mxu0 0
      %1916 = vmatprep.subr.bf16.mxu0 0
      %1917 = vmatpush1.bf16.msra.mxu0 0
      %1918 = vmatprep.subr.bf16.mxu0 0
      %1919 = vmatpush1.bf16.msra.mxu0 0
      %1920 = vmatprep.subr.bf16.mxu0 0
      %1921 = vmatpush1.bf16.msra.mxu0 0
      %1922 = vmatprep.mubr.bf16.mxu0 0
      %1923 = vmatmul.mubr.bf16.gmra.mrb[0].mxu0 %v1885
      %v1924 = vpop.f32.mrb[0].mxu0
      %v1925 = vadd.f32 0.0, %v1924
      %v1926 = vpop.f32.mrb[0].mxu0
      %v1927 = vpop.f32.mrb[0].mxu0
      %v1928 = vpop.f32.mrb[0].mxu0
      %1929 = vdwg.mxu0
      %1932 = vrot.lane.b32.xlu0 %v1437, 8
      %v1933 = vpop.permute.xlu0 %1932
      %1934 = vrot.lane.b32.xlu0 %v1485, 8
      %v1935 = vpop.permute.xlu0 %1934
      %1940 = vrot.lane.b32.xlu0 %v1657, 16
      %v1941 = vpop.permute.xlu0 %1940
      %1942 = vrot.lane.b32.xlu0 %v1705, 16
      %v1943 = vpop.permute.xlu0 %1942
      %1948 = vrot.lane.b32.xlu0 %v1877, 24
      %v1949 = vpop.permute.xlu0 %1948
      %1950 = vrot.lane.b32.xlu0 %v1925, 24
      %v1951 = vpop.permute.xlu0 %1950
      %v1954 = vsel %vm1051, %v1215, %v1933
      %v1955 = vsel %vm1051, %v1263, %v1935
      %vm1956 = vcmask 130048
      %v1957 = vsel %vm1956, %v1954, %v1941
      %v1958 = vsel %vm1956, %v1955, %v1943
      %vm1959 = vcmask 195584
      %v1960 = vsel %vm1959, %v1957, %v1949
      %v1961 = vsel %vm1959, %v1958, %v1951
      %v1962 = vpack.c.bf16 %v1961, %v1960
      %v1963 = vld [vmem:[%s734] sm:$0xf]
      %v1964 = vld [vmem:[%s734 + $0x4] sm:$0xf]
      %v1965 = vld [vmem:[%s734 + $0x8] sm:$0xf]
      %v1966 = vld [vmem:[%s734 + $0xc] sm:$0xf]
      %v1967 = vld [vmem:[%s737] sm:$0x1]
      %v1969 = vlaneseq
      %v1970 = vshrl.u32 %v1969, 7
      %v1971 = vsub.s32 0, %v1970
      %v1972 = vrot.slane %v1967, %v1971
      %v1978 = vunpack.c.l.b16 %v1963
      %v1979 = vunpack.c.l.b16 %v1964
      %v1980 = vunpack.c.l.b16 %v1965
      %v1981 = vunpack.c.l.b16 %v1966
      %v1982 = vpack.c.b16 %v1979, %v1978
      %v1983 = vpack.c.b16 %v1981, %v1980
      %v1987 = vsel %vm924, %v1962, 0
      %1989 = vmatprep.subr.bf16.mxu0 0
      %1990 = vmatpush1.bf16.msra.mxu0 %v1982
      %1991 = vmatprep.subr.bf16.mxu0 0
      %1992 = vmatpush1.bf16.msra.mxu0 %v1983
      %1993 = vmatprep.subr.bf16.mxu0 0
      %1994 = vmatpush1.bf16.msra.mxu0 0
      %1995 = vmatprep.subr.bf16.mxu0 0
      %1996 = vmatpush1.bf16.msra.mxu0 0
      %1997 = vmatprep.subr.bf16.mxu0 0
      %1998 = vmatpush1.bf16.msra.mxu0 0
      %1999 = vmatprep.subr.bf16.mxu0 0
      %2000 = vmatpush1.bf16.msra.mxu0 0
      %2001 = vmatprep.subr.bf16.mxu0 0
      %2002 = vmatpush1.bf16.msra.mxu0 0
      %2003 = vmatprep.subr.bf16.mxu0 0
      %2004 = vmatpush1.bf16.msra.mxu0 0
      %2005 = vmatprep.subr.bf16.mxu0 0
      %2006 = vmatpush1.bf16.msra.mxu0 0
      %2007 = vmatprep.subr.bf16.mxu0 0
      %2008 = vmatpush1.bf16.msra.mxu0 0
      %2009 = vmatprep.subr.bf16.mxu0 0
      %2010 = vmatpush1.bf16.msra.mxu0 0
      %2011 = vmatprep.subr.bf16.mxu0 0
      %2012 = vmatpush1.bf16.msra.mxu0 0
      %2013 = vmatprep.subr.bf16.mxu0 0
      %2014 = vmatpush1.bf16.msra.mxu0 0
      %2015 = vmatprep.subr.bf16.mxu0 0
      %2016 = vmatpush1.bf16.msra.mxu0 0
      %2017 = vmatprep.subr.bf16.mxu0 0
      %2018 = vmatpush1.bf16.msra.mxu0 0
      %2019 = vmatprep.subr.bf16.mxu0 0
      %2020 = vmatpush1.bf16.msra.mxu0 0
      %2021 = vmatprep.mubr.bf16.mxu0 0
      %2022 = vmatmul.mubr.bf16.gmra.mrb[0].mxu0 %v1987
      %v2023 = vpop.f32.mrb[0].mxu0
      %v2024 = vadd.f32 %v1972, %v2023
      %v2025 = vpop.f32.mrb[0].mxu0
      %v2026 = vpop.f32.mrb[0].mxu0
      %v2027 = vadd.f32 %v1972, %v2026
      %v2028 = vpop.f32.mrb[0].mxu0
      %2029 = vdwg.mxu0
      %v2030 = vadd.f32 %v922, %v2024
      %v2031 = vadd.f32 %v923, %v2027
      %v2032 = vsel %vm924, %v2030, 0.0
      %2033 = vadd.xlane.f32.xlu0 %v2032
      %v2034 = vpop.xlane.xlu0 %2033
      %v2035 = vsel %vm924, %v2031, 0.0
      %2036 = vadd.xlane.f32.xlu0 %v2035
      %v2037 = vpop.xlane.xlu0 %2036
      %v2038 = vmul.f32 %v2034, %v931
      %v2039 = vmul.f32 %v2037, %v931
      %v2040 = vsub.f32 %v2030, %v2038
      %v2041 = vsub.f32 %v2031, %v2039
      %v2042 = vmul.f32 %v2040, %v2040
      %v2043 = vmul.f32 %v2041, %v2041
      %v2044 = vsel %vm924, %v2042, 0.0
      %2045 = vadd.xlane.f32.xlu0 %v2044
      %v2046 = vpop.xlane.xlu0 %2045
      %v2047 = vsel %vm924, %v2043, 0.0
      %2048 = vadd.xlane.f32.xlu0 %v2047
      %v2049 = vpop.xlane.xlu0 %2048
      %v2050 = vmul.f32 %v2046, %v931
      %v2051 = vmul.f32 %v2049, %v931
      %v2052 = vadd.f32 %v2050, 1e-12
      %v2053 = vadd.f32 %v2051, 1e-12
      %v2054 = vrsqrt.pop %v2052
      %v2055 = vrsqrt.pop %v2053
      %v2056 = vmul.f32 %v2040, %v2054
      %v2057 = vmul.f32 %v2041, %v2055
      %v2058 = vld [vmem:[%s740] sm:$0x1]
      %v2060 = vlaneseq
      %v2061 = vshrl.u32 %v2060, 7
      %v2062 = vsub.s32 0, %v2061
      %v2063 = vrot.slane %v2058, %v2062
      %v2065 = vmul.f32 %v2056, %v2063
      %v2066 = vmul.f32 %v2057, %v2063
      %v2067 = vld [vmem:[%s743] sm:$0x1]
      %v2069 = vlaneseq
      %v2070 = vshrl.u32 %v2069, 7
      %v2071 = vsub.s32 0, %v2070
      %v2072 = vrot.slane %v2067, %v2071
      %v2074 = vadd.f32 %v2065, %v2072
      %v2075 = vadd.f32 %v2066, %v2072
      %v2076 = vpack.c.bf16 %v2075, %v2074
      %v2077 = vld [vmem:[%s748] sm:$0xf]
      %v2078 = vld [vmem:[%s748 + $0x4] sm:$0xf]
      %v2079 = vld [vmem:[%s748 + $0x8] sm:$0xf]
      %v2080 = vld [vmem:[%s748 + $0xc] sm:$0xf]
      %v2081 = vld [vmem:[%s751] sm:$0x1]
      %v2083 = vlaneseq
      %v2084 = vshrl.u32 %v2083, 7
      %v2085 = vsub.s32 0, %v2084
      %v2086 = vrot.slane %v2081, %v2085
      %v2092 = vunpack.c.l.b16 %v2077
      %v2093 = vunpack.c.l.b16 %v2078
      %v2094 = vunpack.c.l.b16 %v2079
      %v2095 = vunpack.c.l.b16 %v2080
      %v2096 = vpack.c.b16 %v2093, %v2092
      %v2097 = vpack.c.b16 %v2095, %v2094
      %v2101 = vsel %vm924, %v2076, 0
      %2103 = vmatprep.subr.bf16.mxu0 0
      %2104 = vmatpush1.bf16.msra.mxu0 %v2096
      %2105 = vmatprep.subr.bf16.mxu0 0
      %2106 = vmatpush1.bf16.msra.mxu0 %v2097
      %2107 = vmatprep.subr.bf16.mxu0 0
      %2108 = vmatpush1.bf16.msra.mxu0 0
      %2109 = vmatprep.subr.bf16.mxu0 0
      %2110 = vmatpush1.bf16.msra.mxu0 0
      %2111 = vmatprep.subr.bf16.mxu0 0
      %2112 = vmatpush1.bf16.msra.mxu0 0
      %2113 = vmatprep.subr.bf16.mxu0 0
      %2114 = vmatpush1.bf16.msra.mxu0 0
      %2115 = vmatprep.subr.bf16.mxu0 0
      %2116 = vmatpush1.bf16.msra.mxu0 0
      %2117 = vmatprep.subr.bf16.mxu0 0
      %2118 = vmatpush1.bf16.msra.mxu0 0
      %2119 = vmatprep.subr.bf16.mxu0 0
      %2120 = vmatpush1.bf16.msra.mxu0 0
      %2121 = vmatprep.subr.bf16.mxu0 0
      %2122 = vmatpush1.bf16.msra.mxu0 0
      %2123 = vmatprep.subr.bf16.mxu0 0
      %2124 = vmatpush1.bf16.msra.mxu0 0
      %2125 = vmatprep.subr.bf16.mxu0 0
      %2126 = vmatpush1.bf16.msra.mxu0 0
      %2127 = vmatprep.subr.bf16.mxu0 0
      %2128 = vmatpush1.bf16.msra.mxu0 0
      %2129 = vmatprep.subr.bf16.mxu0 0
      %2130 = vmatpush1.bf16.msra.mxu0 0
      %2131 = vmatprep.subr.bf16.mxu0 0
      %2132 = vmatpush1.bf16.msra.mxu0 0
      %2133 = vmatprep.subr.bf16.mxu0 0
      %2134 = vmatpush1.bf16.msra.mxu0 0
      %2135 = vmatprep.mubr.bf16.mxu0 0
      %2136 = vmatmul.mubr.bf16.gmra.mrb[0].mxu0 %v2101
      %v2137 = vpop.f32.mrb[0].mxu0
      %v2138 = vadd.f32 %v2086, %v2137
      %v2139 = vpop.f32.mrb[0].mxu0
      %v2140 = vpop.f32.mrb[0].mxu0
      %v2141 = vadd.f32 %v2086, %v2140
      %v2142 = vpop.f32.mrb[0].mxu0
      %2143 = vdwg.mxu0
      %v2144 = vmul.f32 %v2138, %v2138
      %v2145 = vmul.f32 %v2141, %v2141
      %v2146 = vmul.f32 %v2138, %v2144
      %v2147 = vmul.f32 %v2141, %v2145
      %v2148 = vmul.f32 %v2146, 0.044715
      %v2149 = vmul.f32 %v2147, 0.044715
      %v2150 = vadd.f32 %v2138, %v2148
      %v2151 = vadd.f32 %v2141, %v2149
      %v2152 = vmul.f32 %v2150, 0.7978846
      %v2153 = vmul.f32 %v2151, 0.7978846
      %v2154 = vtanh.pop %v2152
      %v2155 = vtanh.pop %v2153
      %v2156 = vadd.f32 %v2154, 1.0
      %v2157 = vadd.f32 %v2155, 1.0
      %v2158 = vmul.f32 %v2156, 0.5
      %v2159 = vmul.f32 %v2157, 0.5
      %v2160 = vmul.f32 %v2138, %v2158
      %v2161 = vmul.f32 %v2141, %v2159
      %v2162 = vpack.c.bf16 %v2161, %v2160
      %v2163 = vld [vmem:[%s756] sm:$0xf]
      %v2164 = vld [vmem:[%s756 + $0x4] sm:$0xf]
      %v2165 = vld [vmem:[%s756 + $0x8] sm:$0xf]
      %v2166 = vld [vmem:[%s756 + $0xc] sm:$0xf]
      %v2167 = vld [vmem:[%s756 + $0x10] sm:$0xf]
      %v2168 = vld [vmem:[%s756 + $0x14] sm:$0xf]
      %v2169 = vld [vmem:[%s756 + $0x18] sm:$0xf]
      %v2170 = vld [vmem:[%s756 + $0x1c] sm:$0xf]
      %v2171 = vld [vmem:[%s756 + $0x20] sm:$0xf]
      %v2172 = vld [vmem:[%s756 + $0x24] sm:$0xf]
      %v2173 = vld [vmem:[%s756 + $0x28] sm:$0xf]
      %v2174 = vld [vmem:[%s756 + $0x2c] sm:$0xf]
      %v2175 = vld [vmem:[%s756 + $0x30] sm:$0xf]
      %v2176 = vld [vmem:[%s756 + $0x34] sm:$0xf]
      %v2177 = vld [vmem:[%s756 + $0x38] sm:$0xf]
      %v2178 = vld [vmem:[%s756 + $0x3c] sm:$0xf]
      %v2179 = vld [vmem:[%s759] sm:$0x1]
      %v2181 = vlaneseq
      %v2182 = vshrl.u32 %v2181, 7
      %v2183 = vsub.s32 0, %v2182
      %v2184 = vrot.slane %v2179, %v2183
      %v2202 = vunpack.c.l.b16 %v2163
      %v2203 = vunpack.c.l.b16 %v2164
      %v2204 = vunpack.c.l.b16 %v2165
      %v2205 = vunpack.c.l.b16 %v2166
      %v2206 = vunpack.c.l.b16 %v2167
      %v2207 = vunpack.c.l.b16 %v2168
      %v2208 = vunpack.c.l.b16 %v2169
      %v2209 = vunpack.c.l.b16 %v2170
      %v2210 = vunpack.c.l.b16 %v2171
      %v2211 = vunpack.c.l.b16 %v2172
      %v2212 = vunpack.c.l.b16 %v2173
      %v2213 = vunpack.c.l.b16 %v2174
      %v2214 = vunpack.c.l.b16 %v2175
      %v2215 = vunpack.c.l.b16 %v2176
      %v2216 = vunpack.c.l.b16 %v2177
      %v2217 = vunpack.c.l.b16 %v2178
      %v2218 = vpack.c.b16 %v2203, %v2202
      %v2219 = vpack.c.b16 %v2205, %v2204
      %v2220 = vpack.c.b16 %v2207, %v2206
      %v2221 = vpack.c.b16 %v2209, %v2208
      %v2222 = vpack.c.b16 %v2211, %v2210
      %v2223 = vpack.c.b16 %v2213, %v2212
      %v2224 = vpack.c.b16 %v2215, %v2214
      %v2225 = vpack.c.b16 %v2217, %v2216
      %2234 = vmatprep.subr.bf16.mxu0 0
      %2235 = vmatpush1.bf16.msra.mxu0 %v2218
      %2236 = vmatprep.subr.bf16.mxu0 0
      %2237 = vmatpush1.bf16.msra.mxu0 %v2219
      %2238 = vmatprep.subr.bf16.mxu0 0
      %2239 = vmatpush1.bf16.msra.mxu0 %v2220
      %2240 = vmatprep.subr.bf16.mxu0 0
      %2241 = vmatpush1.bf16.msra.mxu0 %v2221
      %2242 = vmatprep.subr.bf16.mxu0 0
      %2243 = vmatpush1.bf16.msra.mxu0 %v2222
      %2244 = vmatprep.subr.bf16.mxu0 0
      %2245 = vmatpush1.bf16.msra.mxu0 %v2223
      %2246 = vmatprep.subr.bf16.mxu0 0
      %2247 = vmatpush1.bf16.msra.mxu0 %v2224
      %2248 = vmatprep.subr.bf16.mxu0 0
      %2249 = vmatpush1.bf16.msra.mxu0 %v2225
      %2250 = vmatprep.subr.bf16.mxu0 0
      %2251 = vmatpush1.bf16.msra.mxu0 0
      %2252 = vmatprep.subr.bf16.mxu0 0
      %2253 = vmatpush1.bf16.msra.mxu0 0
      %2254 = vmatprep.subr.bf16.mxu0 0
      %2255 = vmatpush1.bf16.msra.mxu0 0
      %2256 = vmatprep.subr.bf16.mxu0 0
      %2257 = vmatpush1.bf16.msra.mxu0 0
      %2258 = vmatprep.subr.bf16.mxu0 0
      %2259 = vmatpush1.bf16.msra.mxu0 0
      %2260 = vmatprep.subr.bf16.mxu0 0
      %2261 = vmatpush1.bf16.msra.mxu0 0
      %2262 = vmatprep.subr.bf16.mxu0 0
      %2263 = vmatpush1.bf16.msra.mxu0 0
      %2264 = vmatprep.subr.bf16.mxu0 0
      %2265 = vmatpush1.bf16.msra.mxu0 0
      %2266 = vmatprep.mubr.bf16.mxu0 0
      %2267 = vmatmul.mubr.bf16.gmra.mrb[0].mxu0 %v2162
      %v2268 = vpop.f32.mrb[0].mxu0
      %v2269 = vadd.f32 %v2184, %v2268
      %v2270 = vpop.f32.mrb[0].mxu0
      %v2271 = vpop.f32.mrb[0].mxu0
      %v2272 = vadd.f32 %v2184, %v2271
      %v2273 = vpop.f32.mrb[0].mxu0
      %2274 = vdwg.mxu0
      %v2275 = vadd.f32 %v2030, %v2269
      %v2276 = vadd.f32 %v2031, %v2272
      %2277 = vst.msk [vmem:[#allocation2] sm:$0xff] %vm924, %v2275
      %2278 = vst.msk [vmem:[#allocation2 + $0x8] sm:$0xff] %vm924, %v2276
      %p2279 = scmp.eq.s32.totalorder %s30, 1
      // Predicated region
      $region101: #{image_classifier_finetuner_forward.1} parent=95 // pred_check
        %p2280 = pneg %p2279
      $region102: #{image_classifier_finetuner_forward.1} parent=95 // pred_check_branch
        %2282 = sbr.rel (%p2280) target = $region104
      $region103: #{image_classifier_finetuner_forward.1} parent=95 // pred_region
        %v2285 = vrot.slane %v2276, 7
        %vm2286 = vcmask 1041409
        %v2287 = vsel %vm2286, %v2285, %v2275
        %vm2289 = vcmask 254976
        %v2290 = vsel %vm2289, %v2287, 0.0
        %2291 = vadd.xlane.f32.xlu0 %v2290
        %v2292 = vpop.xlane.xlu0 %2291
        %v2293 = vmul.f32 %v2292, %v931
        %v2295 = vrot.slane %v2293, 1
        %v2298 = vsub.f32 %v2275, %v2293
        %v2299 = vsub.f32 %v2276, %v2295
        %v2300 = vmul.f32 %v2298, %v2298
        %v2301 = vmul.f32 %v2299, %v2299
        %v2304 = vrot.slane %v2301, 7
        %v2305 = vsel %vm2286, %v2304, %v2300
        %v2307 = vsel %vm2289, %v2305, 0.0
        %2308 = vadd.xlane.f32.xlu0 %v2307
        %v2309 = vpop.xlane.xlu0 %2308
        %v2310 = vmul.f32 %v2309, %v931
        %v2311 = vadd.f32 %v2310, 1e-12
        %v2312 = vrsqrt.pop %v2311
        %v2314 = vrot.slane %v2312, 1
        %v2317 = vmul.f32 %v2298, %v2312
        %v2318 = vmul.f32 %v2299, %v2314
        %v2319 = vld [vmem:[%s3] sm:$0x1]
        %v2321 = vlaneseq
        %v2322 = vshrl.u32 %v2321, 7
        %v2323 = vsub.s32 0, %v2322
        %v2324 = vrot.slane %v2319, %v2323
        %v2326 = vmul.f32 %v2317, %v2324
        %v2327 = vmul.f32 %v2318, %v2324
        %v2328 = vld [vmem:[%s4] sm:$0x1]
        %v2330 = vlaneseq
        %v2331 = vshrl.u32 %v2330, 7
        %v2332 = vsub.s32 0, %v2331
        %v2333 = vrot.slane %v2328, %v2332
        %v2335 = vadd.f32 %v2326, %v2333
        %v2336 = vadd.f32 %v2327, %v2333
        %v2337 = vpack.c.bf16 %v2335, %v2335
        %v2338 = vpack.c.bf16 %v2336, %v2336
        %v2339 = vld [vmem:[%s5] sm:$0xf]
        %v2340 = vld [vmem:[%s5 + $0x4] sm:$0xf]
        %v2341 = vld [vmem:[%s5 + $0x8] sm:$0xf]
        %v2342 = vld [vmem:[%s5 + $0xc] sm:$0xf]
        %v2343 = vld [vmem:[%s6] sm:$0x1]
        %v2345 = vlaneseq
        %v2346 = vshrl.u32 %v2345, 7
        %v2347 = vsub.s32 0, %v2346
        %v2348 = vrot.slane %v2343, %v2347
        %v2352 = vunpack.c.l.b16 %v2337
        %v2353 = vunpack.c.l.b16 %v2338
        %v2354 = vrot.slane %v2353, 7
        %v2355 = vsel %vm2286, %v2354, %v2352
        %v2356 = vpack.c.b16 %v2355, %v2355
        %v2361 = vunpack.c.l.b16 %v2339
        %v2362 = vunpack.c.l.b16 %v2340
        %v2363 = vunpack.c.l.b16 %v2341
        %v2364 = vunpack.c.l.b16 %v2342
        %v2365 = vpack.c.b16 %v2362, %v2361
        %v2366 = vpack.c.b16 %v2364, %v2363
        %v2370 = vsel %vm924, %v2356, 0
        %2372 = vmatprep.subr.bf16.mxu0 0
        %2373 = vmatpush1.bf16.msra.mxu0 %v2365
        %2374 = vmatprep.subr.bf16.mxu0 0
        %2375 = vmatpush1.bf16.msra.mxu0 %v2366
        %2376 = vmatprep.subr.bf16.mxu0 0
        %2377 = vmatpush1.bf16.msra.mxu0 0
        %2378 = vmatprep.subr.bf16.mxu0 0
        %2379 = vmatpush1.bf16.msra.mxu0 0
        %2380 = vmatprep.subr.bf16.mxu0 0
        %2381 = vmatpush1.bf16.msra.mxu0 0
        %2382 = vmatprep.subr.bf16.mxu0 0
        %2383 = vmatpush1.bf16.msra.mxu0 0
        %2384 = vmatprep.subr.bf16.mxu0 0
        %2385 = vmatpush1.bf16.msra.mxu0 0
        %2386 = vmatprep.subr.bf16.mxu0 0
        %2387 = vmatpush1.bf16.msra.mxu0 0
        %2388 = vmatprep.subr.bf16.mxu0 0
        %2389 = vmatpush1.bf16.msra.mxu0 0
        %2390 = vmatprep.subr.bf16.mxu0 0
        %2391 = vmatpush1.bf16.msra.mxu0 0
        %2392 = vmatprep.subr.bf16.mxu0 0
        %2393 = vmatpush1.bf16.msra.mxu0 0
        %2394 = vmatprep.subr.bf16.mxu0 0
        %2395 = vmatpush1.bf16.msra.mxu0 0
        %2396 = vmatprep.subr.bf16.mxu0 0
        %2397 = vmatpush1.bf16.msra.mxu0 0
        %2398 = vmatprep.subr.bf16.mxu0 0
        %2399 = vmatpush1.bf16.msra.mxu0 0
        %2400 = vmatprep.subr.bf16.mxu0 0
        %2401 = vmatpush1.bf16.msra.mxu0 0
        %2402 = vmatprep.subr.bf16.mxu0 0
        %2403 = vmatpush1.bf16.msra.mxu0 0
        %2404 = vmatprep.mubr.bf16.mxu0 0
        %2405 = vmatmul.mubr.bf16.gmra.mrb[0].mxu0 %v2370
        %v2406 = vpop.f32.mrb[0].mxu0
        %v2407 = vadd.f32 %v2348, %v2406
        %v2408 = vpop.f32.mrb[0].mxu0
        %v2409 = vpop.f32.mrb[0].mxu0
        %v2410 = vpop.f32.mrb[0].mxu0
        %2411 = vdwg.mxu0
        %vm2412 = vcmask 1041408
        %v2413 = vsel %vm2412, %v2407, 0.0
        %2414 = vst [vmem:[%s19] sm:$0xff] %v2413
      $region104: #{image_classifier_finetuner_forward.1} parent=95 // pred_fallthru
        _
      // Predicated region
      $region105: #{image_classifier_finetuner_forward.1} parent=95 // pred_check
        %p2415 = pneg %p502
      $region106: #{image_classifier_finetuner_forward.1} parent=95 // pred_check_branch
        %2417 = sbr.rel (%p2415) target = $region108
      $region107: #{image_classifier_finetuner_forward.1} parent=95 // pred_region
        _
      $region108: #{image_classifier_finetuner_forward.1} parent=95 // pred_fallthru
        _
      // Predicated region
      $region109: #{image_classifier_finetuner_forward.1} parent=95 // pred_check
        %p2418 = pneg %p502
      $region110: #{image_classifier_finetuner_forward.1} parent=95 // pred_check_branch
        %2420 = sbr.rel (%p2418) target = $region112
      $region111: #{image_classifier_finetuner_forward.1} parent=95 // pred_region
        _
      $region112: #{image_classifier_finetuner_forward.1} parent=95 // pred_fallthru
        _
    $region96: #{image_classifier_finetuner_forward.1} parent=5 // pred_fallthru
      _
    %p2421 = scmp.le.s32.totalorder 2, %s25
    // Predicated region
    $region113: #{image_classifier_finetuner_forward.1} parent=5 // pred_check
      %p2422 = pneg %p2421
    $region114: #{image_classifier_finetuner_forward.1} parent=5 // pred_check_branch
      %2424 = sbr.rel (%p2422) target = $region116
    $region115: #{image_classifier_finetuner_forward.1} parent=5 // pred_region
      %s2425 = ssub.s32 %s25, 2
    $region116: #{image_classifier_finetuner_forward.1} parent=5 // pred_fallthru
      _
  $region6: #{image_classifier_finetuner_forward.1} parent=0 // loop_footer
    %s29 = sadd.s32 1, %s25
  $region7: #{image_classifier_finetuner_forward.1} parent=0 // loop_footer_branch
    %24 = sbr.rel target = $region3
  $region8: #{image_classifier_finetuner_forward.1} parent=0 // loop_exit
    _

</llo_original>
